<compile_context>
chip_gen: v6e
topology: v6e:2x2x1
jax: 0.10.0
libtpu: 0.0.40
codegen_flags: <defaults>
</compile_context>

<pallas_src>
import functools

import jax
import jax.numpy as jnp
from jax.experimental import pallas as pl
from jax.experimental.pallas import tpu as pltpu

LEAKY_SLOPE = 0.01       # nn.LeakyReLU default negative_slope
IN_F = 28 * 28           # 784
H1 = 512
H2 = 100
OUT = 10
H2_PAD = 128             # 100 padded to a lane multiple
OUT_PAD = 128            # 10 padded to a lane multiple
TILE_B_MAX = 512         # big tiles amortize the ~0.35 us/step grid overhead


def _round_up(n, m):
    return ((n + m - 1) // m) * m


def _leaky_relu(x):
    return jnp.where(x > 0, x, LEAKY_SLOPE * x)


def mlp_kernel(x_ref, w1_ref, b1_ref, w2_ref, b2_ref, w3_ref, b3_ref, o_ref):
    # x arrives as f32 straight from HBM (no wrapper prep pass); cast to bf16
    # here so the MXU runs bf16 with f32 accumulation. Bias add + LeakyReLU
    # stay in f32 on the VPU (hidden under the vmatmul slot).
    x = x_ref[...].astype(jnp.bfloat16)                              # (TB, 784)
    h = jnp.dot(x, w1_ref[...], preferred_element_type=jnp.float32) + b1_ref[...]
    h = _leaky_relu(h)
    h = jnp.dot(h.astype(jnp.bfloat16), w2_ref[...],
                preferred_element_type=jnp.float32) + b2_ref[...]
    h = _leaky_relu(h)
    o = jnp.dot(h.astype(jnp.bfloat16), w3_ref[...],
                preferred_element_type=jnp.float32) + b3_ref[...]
    o_ref[...] = o.astype(o_ref.dtype)                               # (TB, 128) lane-dense


def prepare_params(params):
    """One-time parameter prep (call ONCE, outside the per-step forward):
    bf16 weights for the MXU, narrow dims zero-padded to 128 lanes so every
    kernel tile is lane-dense. Weights are stored (in, out); loading a real
    PyTorch state_dict (out, in) requires a transpose first."""
    w1, b1, w2, b2, w3, b3 = params
    w1b = w1.astype(jnp.bfloat16)                                    # (784, 512)
    w2b = jnp.zeros((H1, H2_PAD), jnp.bfloat16).at[:, :H2].set(
        w2.astype(jnp.bfloat16))                                     # (512, 128)
    w3b = jnp.zeros((H2_PAD, OUT_PAD), jnp.bfloat16).at[:H2, :OUT].set(
        w3.astype(jnp.bfloat16))                                     # (128, 128)
    b1f = b1.astype(jnp.float32).reshape(1, H1)                      # (1, 512)
    b2f = jnp.zeros((1, H2_PAD), jnp.float32).at[:, :H2].set(
        b2.astype(jnp.float32).reshape(1, H2))                       # (1, 128)
    b3f = jnp.zeros((1, OUT_PAD), jnp.float32).at[:, :OUT].set(
        b3.astype(jnp.float32).reshape(1, OUT))                      # (1, 128)
    return (w1b, b1f, w2b, b2f, w3b, b3f)


def _choose_tile_b(batch):
    """Sublane-aligned batch tile. Tiny batches: one right-sized tile (no
    padding to 256 -> low latency). Bigger batches: large tiles, but capped
    so the grid has >=2 steps (v7x megacore + input/output double-buffering)."""
    b_aligned = _round_up(batch, 8)
    if b_aligned <= 256:
        return b_aligned
    return min(TILE_B_MAX, _round_up(pl.cdiv(b_aligned, 2), 256))


@jax.jit
def linear_network2_forward(x, prepared_params):
    """x: (B, 1, 28, 28) or (B, 28, 28) float32. prepared_params from
    prepare_params(). Returns (B, 10) float32."""
    w1b, b1f, w2b, b2f, w3b, b3f = prepared_params
    B = x.shape[0]
    x2d = x.reshape(B, -1).astype(jnp.float32)       # nn.Flatten: (B, 784), stays f32
    assert x2d.shape[1] == IN_F

    tile_b = _choose_tile_b(B)
    grid = (pl.cdiv(B, tile_b),)                     # ragged last tile handled by Pallas

    const = lambda i: (0, 0)                         # weights resident across the batch grid
    flops = 2 * B * (IN_F * H1 + H1 * H2_PAD + H2_PAD * OUT_PAD)
    bytes_accessed = (
        B * IN_F * 4                                                    # x (f32)
        + (w1b.size + w2b.size + w3b.size) * 2                          # bf16 weights
        + (b1f.size + b2f.size + b3f.size) * 4                          # f32 biases
        + B * OUT_PAD * 4                                               # output slab
    )

    out_padded = pl.pallas_call(
        mlp_kernel,
        out_shape=jax.ShapeDtypeStruct((B, OUT_PAD), jnp.float32),
        grid_spec=pltpu.PrefetchScalarGridSpec(
            num_scalar_prefetch=0,
            grid=grid,
            in_specs=[
                pl.BlockSpec((tile_b, IN_F), lambda i: (i, 0)),   # x tile (f32)
                pl.BlockSpec((IN_F, H1), const),                  # w1
                pl.BlockSpec((1, H1), const),                     # b1
                pl.BlockSpec((H1, H2_PAD), const),                # w2
                pl.BlockSpec((1, H2_PAD), const),                 # b2
                pl.BlockSpec((H2_PAD, OUT_PAD), const),           # w3
                pl.BlockSpec((1, OUT_PAD), const),                # b3
            ],
            out_specs=pl.BlockSpec((tile_b, OUT_PAD), lambda i: (i, 0)),
        ),
        compiler_params=pltpu.CompilerParams(
            dimension_semantics=("parallel",),
        ),
        cost_estimate=pl.CostEstimate(
            flops=flops, transcendentals=0, bytes_accessed=bytes_accessed),
    )(x2d, w1b, b1f, w2b, b2f, w3b, b3f)

    # Padded lanes (10 -> 128) are sliced off here; padded/ragged batch rows
    # never reach HBM (masked boundary stores).
    return out_padded[:, :OUT]


def init_params(key):
    """Deterministic init mimicking PyTorch nn.Linear default
    (uniform(-1/sqrt(fan_in), 1/sqrt(fan_in)) for weight and bias).
    Weights stored as (in, out); biases as (1, out)."""
    dims = [(IN_F, H1), (H1, H2), (H2, OUT)]
    params = []
    for i, (fan_in, fan_out) in enumerate(dims):
        kw, kb = jax.random.split(jax.random.fold_in(key, i))
        bound = 1.0 / jnp.sqrt(jnp.float32(fan_in))
        w = jax.random.uniform(kw, (fan_in, fan_out), jnp.float32, -bound, bound)
        b = jax.random.uniform(kb, (1, fan_out), jnp.float32, -bound, bound)
        params += [w, b]
    return tuple(params)


def reference_forward(x, params):
    w1, b1, w2, b2, w3, b3 = params
    h = x.reshape(x.shape[0], -1)
    h = h @ w1 + b1
    h = jnp.where(h > 0, h, LEAKY_SLOPE * h)
    h = h @ w2 + b2
    h = jnp.where(h > 0, h, LEAKY_SLOPE * h)
    return h @ w3 + b3


if __name__ == "__main__":
    key = jax.random.PRNGKey(0)
    kx, kp = jax.random.split(key)

    # Small, MNIST-shaped example input (NCHW, like PyTorch).
    x = jax.random.normal(kx, (2, 1, 28, 28), jnp.float32)
    params = init_params(kp)

    # One-time weight prep (kept out of the per-call forward).
    prepared = prepare_params(params)
    prepared = jax.block_until_ready(prepared)

    out = linear_network2_forward(x, prepared)
    out = jax.block_until_ready(out)

    ref = reference_forward(x, params)
    assert out.shape == (2, 10), out.shape
    # bf16 MXU inputs with f32 accumulation -> small rounding vs f32 reference.
    assert jnp.allclose(out, ref, atol=2e-2, rtol=2e-2), "mismatch vs reference"

    print("KERNEL_OK")
</pallas_src>

<mosaic_0001>
module attributes {stable_mosaic.version = 11 : i64} {
  func.func @mlp_kernel(%arg0: i32, %arg1: memref<8x784xf32, #tpu.memory_space<vmem>>, %arg2: memref<784x512xbf16, #tpu.memory_space<vmem>>, %arg3: memref<1x512xf32, #tpu.memory_space<vmem>>, %arg4: memref<512x128xbf16, #tpu.memory_space<vmem>>, %arg5: memref<1x128xf32, #tpu.memory_space<vmem>>, %arg6: memref<128x128xbf16, #tpu.memory_space<vmem>>, %arg7: memref<1x128xf32, #tpu.memory_space<vmem>>, %arg8: memref<8x128xf32, #tpu.memory_space<vmem>>) attributes {dimension_semantics = [#tpu.dimension_semantics<parallel>], iteration_bounds = array<i64: 1>, scalar_prefetch = 0 : i64, scratch_operands = 0 : i64, tpu.core_type = #tpu.core_type<tc>, window_params = [{transform_indices = @transform_0, window_bounds = array<i64: 8, 784>}, {pipeline_mode = #tpu.pipeline_mode<synchronous>, transform_indices = @transform_1, window_bounds = array<i64: 784, 512>}, {pipeline_mode = #tpu.pipeline_mode<synchronous>, transform_indices = @transform_2, window_bounds = array<i64: 1, 512>}, {pipeline_mode = #tpu.pipeline_mode<synchronous>, transform_indices = @transform_3, window_bounds = array<i64: 512, 128>}, {pipeline_mode = #tpu.pipeline_mode<synchronous>, transform_indices = @transform_4, window_bounds = array<i64: 1, 128>}, {pipeline_mode = #tpu.pipeline_mode<synchronous>, transform_indices = @transform_5, window_bounds = array<i64: 128, 128>}, {pipeline_mode = #tpu.pipeline_mode<synchronous>, transform_indices = @transform_6, window_bounds = array<i64: 1, 128>}, {transform_indices = @transform_7, window_bounds = array<i64: 8, 128>}]} {
    %c0 = arith.constant 0 : index
    %c0_0 = arith.constant 0 : index
    %0 = vector.load %arg1[%c0, %c0_0] : memref<8x784xf32, #tpu.memory_space<vmem>>, vector<8x784xf32>
    %1 = arith.truncf %0 : vector<8x784xf32> to vector<8x784xbf16>
    %c0_1 = arith.constant 0 : index
    %c0_2 = arith.constant 0 : index
    %2 = vector.load %arg2[%c0_1, %c0_2] : memref<784x512xbf16, #tpu.memory_space<vmem>>, vector<784x512xbf16>
    %cst = arith.constant dense<0.000000e+00> : vector<8x512xf32>
    %3 = tpu.matmul %1, %2, %cst {dimension_numbers = #tpu.dot_dimension_numbers<[1], [0], [0], [1], [0, 0, 1, 1], [], []>} : vector<8x784xbf16>, vector<784x512xbf16>, vector<8x512xf32> -> vector<8x512xf32>
    %c0_3 = arith.constant 0 : index
    %c0_4 = arith.constant 0 : index
    %4 = vector.load %arg3[%c0_3, %c0_4] : memref<1x512xf32, #tpu.memory_space<vmem>>, vector<1x512xf32>
    %5 = vector.broadcast %4 : vector<1x512xf32> to vector<8x512xf32>
    %6 = arith.addf %3, %5 : vector<8x512xf32>
    %cst_5 = arith.constant 0.000000e+00 : f32
    %7 = vector.broadcast %cst_5 : f32 to vector<8x512xf32>
    %8 = arith.cmpf ogt, %6, %7 : vector<8x512xf32>
    %cst_6 = arith.constant 0.00999999977 : f32
    %9 = vector.broadcast %cst_6 : f32 to vector<8x512xf32>
    %10 = arith.mulf %9, %6 : vector<8x512xf32>
    %11 = arith.select %8, %6, %10 : vector<8x512xi1>, vector<8x512xf32>
    %12 = arith.truncf %11 : vector<8x512xf32> to vector<8x512xbf16>
    %c0_7 = arith.constant 0 : index
    %c0_8 = arith.constant 0 : index
    %13 = vector.load %arg4[%c0_7, %c0_8] : memref<512x128xbf16, #tpu.memory_space<vmem>>, vector<512x128xbf16>
    %cst_9 = arith.constant dense<0.000000e+00> : vector<8x128xf32>
    %14 = tpu.matmul %12, %13, %cst_9 {dimension_numbers = #tpu.dot_dimension_numbers<[1], [0], [0], [1], [0, 0, 1, 1], [], []>} : vector<8x512xbf16>, vector<512x128xbf16>, vector<8x128xf32> -> vector<8x128xf32>
    %c0_10 = arith.constant 0 : index
    %c0_11 = arith.constant 0 : index
    %15 = vector.load %arg5[%c0_10, %c0_11] : memref<1x128xf32, #tpu.memory_space<vmem>>, vector<1x128xf32>
    %16 = vector.broadcast %15 : vector<1x128xf32> to vector<8x128xf32>
    %17 = arith.addf %14, %16 : vector<8x128xf32>
    %cst_12 = arith.constant 0.000000e+00 : f32
    %18 = vector.broadcast %cst_12 : f32 to vector<8x128xf32>
    %19 = arith.cmpf ogt, %17, %18 : vector<8x128xf32>
    %cst_13 = arith.constant 0.00999999977 : f32
    %20 = vector.broadcast %cst_13 : f32 to vector<8x128xf32>
    %21 = arith.mulf %20, %17 : vector<8x128xf32>
    %22 = arith.select %19, %17, %21 : vector<8x128xi1>, vector<8x128xf32>
    %23 = arith.truncf %22 : vector<8x128xf32> to vector<8x128xbf16>
    %c0_14 = arith.constant 0 : index
    %c0_15 = arith.constant 0 : index
    %24 = vector.load %arg6[%c0_14, %c0_15] : memref<128x128xbf16, #tpu.memory_space<vmem>>, vector<128x128xbf16>
    %cst_16 = arith.constant dense<0.000000e+00> : vector<8x128xf32>
    %25 = tpu.matmul %23, %24, %cst_16 {dimension_numbers = #tpu.dot_dimension_numbers<[1], [0], [0], [1], [0, 0, 1, 1], [], []>} : vector<8x128xbf16>, vector<128x128xbf16>, vector<8x128xf32> -> vector<8x128xf32>
    %c0_17 = arith.constant 0 : index
    %c0_18 = arith.constant 0 : index
    %26 = vector.load %arg7[%c0_17, %c0_18] : memref<1x128xf32, #tpu.memory_space<vmem>>, vector<1x128xf32>
    %27 = vector.broadcast %26 : vector<1x128xf32> to vector<8x128xf32>
    %28 = arith.addf %25, %27 : vector<8x128xf32>
    %c0_19 = arith.constant 0 : index
    %c0_20 = arith.constant 0 : index
    %29 = vector.load %arg8[%c0_19, %c0_20] : memref<8x128xf32, #tpu.memory_space<vmem>>, vector<8x128xf32>
    tpu.vector_store %arg8[%c0_19, %c0_20], %28 {strides = array<i32>} : memref<8x128xf32, #tpu.memory_space<vmem>>, vector<8x128xf32>,
    return
  }
  func.func @transform_0(%arg0: i32) -> (i32, i32) {
    %c0_i32 = arith.constant 0 : i32
    %c0_i32_0 = arith.constant 0 : i32
    return %arg0, %c0_i32 : i32, i32
  }
  func.func @transform_1(%arg0: i32) -> (i32, i32) {
    %c0_i32 = arith.constant 0 : i32
    %c0_i32_0 = arith.constant 0 : i32
    %c0_i32_1 = arith.constant 0 : i32
    return %c0_i32, %c0_i32_0 : i32, i32
  }
  func.func @transform_2(%arg0: i32) -> (i32, i32) {
    %c0_i32 = arith.constant 0 : i32
    %c0_i32_0 = arith.constant 0 : i32
    %c0_i32_1 = arith.constant 0 : i32
    return %c0_i32, %c0_i32_0 : i32, i32
  }
  func.func @transform_3(%arg0: i32) -> (i32, i32) {
    %c0_i32 = arith.constant 0 : i32
    %c0_i32_0 = arith.constant 0 : i32
    %c0_i32_1 = arith.constant 0 : i32
    return %c0_i32, %c0_i32_0 : i32, i32
  }
  func.func @transform_4(%arg0: i32) -> (i32, i32) {
    %c0_i32 = arith.constant 0 : i32
    %c0_i32_0 = arith.constant 0 : i32
    %c0_i32_1 = arith.constant 0 : i32
    return %c0_i32, %c0_i32_0 : i32, i32
  }
  func.func @transform_5(%arg0: i32) -> (i32, i32) {
    %c0_i32 = arith.constant 0 : i32
    %c0_i32_0 = arith.constant 0 : i32
    %c0_i32_1 = arith.constant 0 : i32
    return %c0_i32, %c0_i32_0 : i32, i32
  }
  func.func @transform_6(%arg0: i32) -> (i32, i32) {
    %c0_i32 = arith.constant 0 : i32
    %c0_i32_0 = arith.constant 0 : i32
    %c0_i32_1 = arith.constant 0 : i32
    return %c0_i32, %c0_i32_0 : i32, i32
  }
  func.func @transform_7(%arg0: i32) -> (i32, i32) {
    %c0_i32 = arith.constant 0 : i32
    %c0_i32_0 = arith.constant 0 : i32
    return %arg0, %c0_i32 : i32, i32
  }
}

</mosaic_0001>

<llo_original>
// kernel: linear_network2_forward.1
$region0: #{linear_network2_forward.1}
  #allocation0 [shape = 'u32[]', space=smem, size = 0x4, offset = 0x4, fixed_abs, tag = 'smem constant byte address 0x4 - core index']
  #allocation1 [shape = 'u32[144,128]{1,0:T(1,128)}', space=vmem, size = 0x12000, scoped, tag = 'internal scratch']
  %s0 = inlined_call_operand.vmem [shape: f32[2,784], index: 0, kind: input, shape index: {}]
  %s1 = inlined_call_operand.hbm [shape: bf16[784,512], index: 1, kind: input, shape index: {}]
  %s2 = inlined_call_operand.vmem [shape: f32[1,512], index: 2, kind: input, shape index: {}]
  %s3 = inlined_call_operand.hbm [shape: bf16[512,128], index: 3, kind: input, shape index: {}]
  %s4 = inlined_call_operand.vmem [shape: f32[1,128], index: 4, kind: input, shape index: {}]
  %s5 = inlined_call_operand.vmem [shape: bf16[128,128], index: 5, kind: input, shape index: {}]
  %s6 = inlined_call_operand.vmem [shape: f32[1,128], index: 6, kind: input, shape index: {}]
  %s7 = inlined_call_operand.hbm [shape: f32[2,128], index: 7, kind: output, shape index: {}]
  %s8 = sld [smem:[#allocation0]]
  $region46: #{linear_network2_forward.1} parent=0
    _
  %s10 = ssub.s32 1, %s8
  %s11 = scalar_select 0, %s10, %s8
  $region1: #{linear_network2_forward.1} parent=0
    #allocation2 [shape = 'u8[802816]{0}', space=vmem, size = 0xc4000, scoped, tag = 'input window, operand 1, single buffered']
    #allocation3 [shape = 's32[1]{0}', space=sflag, size = 0x4, scoped, tag = 'scoped memory for linear_network2_forward.1']
    #allocation4 [shape = 's32[1]{0}', space=sflag, size = 0x4, scoped, tag = 'scoped memory for linear_network2_forward.1']
    #allocation5 [shape = 'u8[131072]{0}', space=vmem, size = 0x20000, scoped, tag = 'input window, operand 3, single buffered']
    #allocation6 [shape = 's32[1]{0}', space=sflag, size = 0x4, scoped, tag = 'scoped memory for linear_network2_forward.1']
    #allocation7 [shape = 'u8[4096]{0}', space=vmem, size = 0x1000, scoped, tag = 'output window, operand 0, single buffered']
    %12 = vsyncpa [#allocation3], 0
    %13 = vsyncpa [#allocation6], 0
    %14 = vsyncpa [#allocation4], 0
    // Predicated region
    $region2: #{linear_network2_forward.1} parent=1 // pred_check
      _
    $region3: #{linear_network2_forward.1} parent=1 // pred_check_branch
      %16 = sbr.rel (0) target = $region5
    $region4: #{linear_network2_forward.1} parent=1 // pred_region
      _
    $region5: #{linear_network2_forward.1} parent=1 // pred_fallthru
      _
    // Predicated region
    $region6: #{linear_network2_forward.1} parent=1 // pred_check
      _
    $region7: #{linear_network2_forward.1} parent=1 // pred_check_branch
      %18 = sbr.rel (0) target = $region9
    $region8: #{linear_network2_forward.1} parent=1 // pred_region
      %s20 = ssub.s32 25088, 25088
      %21 = vsyncadd [#allocation3], %s20
      %s22 = sshll.u32 [#allocation2], 4
      %s23 = int_to_ptr.vmem [resolvable:$true] %s22
      %28 = dma.hbm_to_vmem [thread:$0]  %s1, 25088, %s23, [#allocation3], 256, 256, 16
    $region9: #{linear_network2_forward.1} parent=1 // pred_fallthru
      _
    // Predicated region
    $region10: #{linear_network2_forward.1} parent=1 // pred_check
      _
    $region11: #{linear_network2_forward.1} parent=1 // pred_check_branch
      %30 = sbr.rel (0) target = $region13
    $region12: #{linear_network2_forward.1} parent=1 // pred_region
      _
    $region13: #{linear_network2_forward.1} parent=1 // pred_fallthru
      _
    // Predicated region
    $region14: #{linear_network2_forward.1} parent=1 // pred_check
      _
    $region15: #{linear_network2_forward.1} parent=1 // pred_check_branch
      %32 = sbr.rel (0) target = $region17
    $region16: #{linear_network2_forward.1} parent=1 // pred_region
      %s34 = ssub.s32 4096, 4096
      %35 = vsyncadd [#allocation6], %s34
      %s36 = sshll.u32 [#allocation5], 4
      %s37 = int_to_ptr.vmem [resolvable:$true] %s36
      %42 = dma.hbm_to_vmem [thread:$0]  %s3, 4096, %s37, [#allocation6], 64, 64, 4
    $region17: #{linear_network2_forward.1} parent=1 // pred_fallthru
      _
    // Predicated region
    $region18: #{linear_network2_forward.1} parent=1 // pred_check
      _
    $region19: #{linear_network2_forward.1} parent=1 // pred_check_branch
      %44 = sbr.rel (0) target = $region21
    $region20: #{linear_network2_forward.1} parent=1 // pred_region
      _
    $region21: #{linear_network2_forward.1} parent=1 // pred_fallthru
      _
    // Predicated region
    $region22: #{linear_network2_forward.1} parent=1 // pred_check
      _
    $region23: #{linear_network2_forward.1} parent=1 // pred_check_branch
      %46 = sbr.rel (0) target = $region25
    $region24: #{linear_network2_forward.1} parent=1 // pred_region
      _
    $region25: #{linear_network2_forward.1} parent=1 // pred_fallthru
      _
    // Predicated region
    $region26: #{linear_network2_forward.1} parent=1 // pred_check
      _
    $region27: #{linear_network2_forward.1} parent=1 // pred_check_branch
      %48 = sbr.rel (0) target = $region29
    $region28: #{linear_network2_forward.1} parent=1 // pred_region
      _
    $region29: #{linear_network2_forward.1} parent=1 // pred_fallthru
      _
    // Predicated region
    $region30: #{linear_network2_forward.1} parent=1 // pred_check
      _
    $region31: #{linear_network2_forward.1} parent=1 // pred_check_branch
      %50 = sbr.rel (0) target = $region33
    $region32: #{linear_network2_forward.1} parent=1 // pred_region
      %51 = dma.done [#allocation3], 25088
    $region33: #{linear_network2_forward.1} parent=1 // pred_fallthru
      _
    // Predicated region
    $region34: #{linear_network2_forward.1} parent=1 // pred_check
      _
    $region35: #{linear_network2_forward.1} parent=1 // pred_check_branch
      %53 = sbr.rel (0) target = $region37
    $region36: #{linear_network2_forward.1} parent=1 // pred_region
      %54 = dma.done [#allocation6], 4096
    $region37: #{linear_network2_forward.1} parent=1 // pred_fallthru
      _
    %v56 = vld [vmem:[%s0] sm:$0xff]
    %v57 = vld [vmem:[%s0 + $0x8] sm:$0x3f]
    %v58 = vld [vmem:[%s0 + $0xe] sm:$0xff]
    %v59 = vld [vmem:[%s0 + $0x16] sm:$0x3f]
    %v60 = vld [vmem:[%s0 + $0x1c] sm:$0xff]
    %v61 = vld [vmem:[%s0 + $0x24] sm:$0x3f]
    %v62 = vld [vmem:[%s0 + $0x2a] sm:$0xff]
    %v63 = vld [vmem:[%s0 + $0x32] sm:$0x3f]
    %v72 = vcombine.low %v56, %v58
    %v73 = vcombine.high %v56, %v58
    %v74 = vcombine.low %v60, %v62
    %v75 = vcombine.high %v60, %v62
    %v77 = vunpack.c.l.s4 1983009808
    %v78 = vunpack.c.0.s8 %v77
    %v79 = vlaneseq
    %v80 = vshrl.u32 %v79, 7
    %v81 = vsub.s32 %v78, %v80
    %v82 = vrot.slane %v72, %v81
    %v84 = vunpack.c.l.s4 1983009808
    %v85 = vunpack.c.0.s8 %v84
    %v86 = vlaneseq
    %v87 = vshrl.u32 %v86, 7
    %v88 = vsub.s32 %v85, %v87
    %v89 = vrot.slane %v73, %v88
    %v91 = vunpack.c.l.s4 1983009808
    %v92 = vunpack.c.0.s8 %v91
    %v93 = vlaneseq
    %v94 = vshrl.u32 %v93, 7
    %v95 = vsub.s32 %v92, %v94
    %v96 = vrot.slane %v74, %v95
    %v98 = vunpack.c.l.s4 1983009808
    %v99 = vunpack.c.0.s8 %v98
    %v100 = vlaneseq
    %v101 = vshrl.u32 %v100, 7
    %v102 = vsub.s32 %v99, %v101
    %v103 = vrot.slane %v75, %v102
    %v104 = vcombine.low %v82, %v96
    %v105 = vcombine.high %v82, %v96
    %v106 = vcombine.low %v89, %v103
    %v107 = vcombine.high %v89, %v103
    %v108 = vcombine.low %v57, %v59
    %v109 = vcombine.high %v57, %v59
    %v110 = vcombine.low %v61, %v63
    %v111 = vcombine.high %v61, %v63
    %v113 = vunpack.c.l.s4 1983009808
    %v114 = vunpack.c.0.s8 %v113
    %v115 = vlaneseq
    %v116 = vshrl.u32 %v115, 7
    %v117 = vsub.s32 %v114, %v116
    %v118 = vrot.slane %v108, %v117
    %v120 = vunpack.c.l.s4 1983009808
    %v121 = vunpack.c.0.s8 %v120
    %v122 = vlaneseq
    %v123 = vshrl.u32 %v122, 7
    %v124 = vsub.s32 %v121, %v123
    %v125 = vrot.slane %v109, %v124
    %v127 = vunpack.c.l.s4 1983009808
    %v128 = vunpack.c.0.s8 %v127
    %v129 = vlaneseq
    %v130 = vshrl.u32 %v129, 7
    %v131 = vsub.s32 %v128, %v130
    %v132 = vrot.slane %v110, %v131
    %v134 = vunpack.c.l.s4 1983009808
    %v135 = vunpack.c.0.s8 %v134
    %v136 = vlaneseq
    %v137 = vshrl.u32 %v136, 7
    %v138 = vsub.s32 %v135, %v137
    %v139 = vrot.slane %v111, %v138
    %v140 = vcombine.low %v118, %v132
    %v141 = vcombine.high %v118, %v132
    %v142 = vcombine.low %v125, %v139
    %v150 = vpack.c.bf16 %v104, %v104
    %v151 = vpack.c.bf16 %v105, %v105
    %v152 = vpack.c.bf16 %v106, %v106
    %v153 = vpack.c.bf16 %v107, %v107
    %v154 = vpack.c.bf16 %v140, %v140
    %v155 = vpack.c.bf16 %v141, %v141
    %v156 = vpack.c.bf16 %v142, %v142
    %v157 = vld [vmem:[#allocation2] sm:$0xff]
    %v158 = vld [vmem:[#allocation2 + $0x8] sm:$0xff]
    %v159 = vld [vmem:[#allocation2 + $0x10] sm:$0xff]
    %v160 = vld [vmem:[#allocation2 + $0x18] sm:$0xff]
    %v161 = vld [vmem:[#allocation2 + $0x20] sm:$0xff]
    %v162 = vld [vmem:[#allocation2 + $0x28] sm:$0xff]
    %v163 = vld [vmem:[#allocation2 + $0x30] sm:$0xff]
    %v164 = vld [vmem:[#allocation2 + $0x38] sm:$0xff]
    %v165 = vld [vmem:[#allocation2 + $0x40] sm:$0xff]
    %v166 = vld [vmem:[#allocation2 + $0x48] sm:$0xff]
    %v167 = vld [vmem:[#allocation2 + $0x50] sm:$0xff]
    %v168 = vld [vmem:[#allocation2 + $0x58] sm:$0xff]
    %v169 = vld [vmem:[#allocation2 + $0x60] sm:$0xff]
    %v170 = vld [vmem:[#allocation2 + $0x68] sm:$0xff]
    %v171 = vld [vmem:[#allocation2 + $0x70] sm:$0xff]
    %v172 = vld [vmem:[#allocation2 + $0x78] sm:$0xff]
    %v173 = vld [vmem:[#allocation2 + $0x80] sm:$0xff]
    %v174 = vld [vmem:[#allocation2 + $0x88] sm:$0xff]
    %v175 = vld [vmem:[#allocation2 + $0x90] sm:$0xff]
    %v176 = vld [vmem:[#allocation2 + $0x98] sm:$0xff]
    %v177 = vld [vmem:[#allocation2 + $0xa0] sm:$0xff]
    %v178 = vld [vmem:[#allocation2 + $0xa8] sm:$0xff]
    %v179 = vld [vmem:[#allocation2 + $0xb0] sm:$0xff]
    %v180 = vld [vmem:[#allocation2 + $0xb8] sm:$0xff]
    %v181 = vld [vmem:[#allocation2 + $0xc0] sm:$0xff]
    %v182 = vld [vmem:[#allocation2 + $0xc8] sm:$0xff]
    %v183 = vld [vmem:[#allocation2 + $0xd0] sm:$0xff]
    %v184 = vld [vmem:[#allocation2 + $0xd8] sm:$0xff]
    %v185 = vld [vmem:[#allocation2 + $0xe0] sm:$0xff]
    %v186 = vld [vmem:[#allocation2 + $0xe8] sm:$0xff]
    %v187 = vld [vmem:[#allocation2 + $0xf0] sm:$0xff]
    %v188 = vld [vmem:[#allocation2 + $0xf8] sm:$0xff]
    %v189 = vld [vmem:[#allocation2 + $0x100] sm:$0xff]
    %v190 = vld [vmem:[#allocation2 + $0x108] sm:$0xff]
    %v191 = vld [vmem:[#allocation2 + $0x110] sm:$0xff]
    %v192 = vld [vmem:[#allocation2 + $0x118] sm:$0xff]
    %v193 = vld [vmem:[#allocation2 + $0x120] sm:$0xff]
    %v194 = vld [vmem:[#allocation2 + $0x128] sm:$0xff]
    %v195 = vld [vmem:[#allocation2 + $0x130] sm:$0xff]
    %v196 = vld [vmem:[#allocation2 + $0x138] sm:$0xff]
    %v197 = vld [vmem:[#allocation2 + $0x140] sm:$0xff]
    %v198 = vld [vmem:[#allocation2 + $0x148] sm:$0xff]
    %v199 = vld [vmem:[#allocation2 + $0x150] sm:$0xff]
    %v200 = vld [vmem:[#allocation2 + $0x158] sm:$0xff]
    %v201 = vld [vmem:[#allocation2 + $0x160] sm:$0xff]
    %v202 = vld [vmem:[#allocation2 + $0x168] sm:$0xff]
    %v203 = vld [vmem:[#allocation2 + $0x170] sm:$0xff]
    %v204 = vld [vmem:[#allocation2 + $0x178] sm:$0xff]
    %v205 = vld [vmem:[#allocation2 + $0x180] sm:$0xff]
    %v206 = vld [vmem:[#allocation2 + $0x188] sm:$0xff]
    %v207 = vld [vmem:[#allocation2 + $0x190] sm:$0xff]
    %v208 = vld [vmem:[#allocation2 + $0x198] sm:$0xff]
    %v209 = vld [vmem:[#allocation2 + $0x1a0] sm:$0xff]
    %v210 = vld [vmem:[#allocation2 + $0x1a8] sm:$0xff]
    %v211 = vld [vmem:[#allocation2 + $0x1b0] sm:$0xff]
    %v212 = vld [vmem:[#allocation2 + $0x1b8] sm:$0xff]
    %v213 = vld [vmem:[#allocation2 + $0x1c0] sm:$0xff]
    %v214 = vld [vmem:[#allocation2 + $0x1c8] sm:$0xff]
    %v215 = vld [vmem:[#allocation2 + $0x1d0] sm:$0xff]
    %v216 = vld [vmem:[#allocation2 + $0x1d8] sm:$0xff]
    %v217 = vld [vmem:[#allocation2 + $0x1e0] sm:$0xff]
    %v218 = vld [vmem:[#allocation2 + $0x1e8] sm:$0xff]
    %v219 = vld [vmem:[#allocation2 + $0x1f0] sm:$0xff]
    %v220 = vld [vmem:[#allocation2 + $0x1f8] sm:$0xff]
    %v221 = vld [vmem:[#allocation2 + $0x200] sm:$0xff]
    %v222 = vld [vmem:[#allocation2 + $0x208] sm:$0xff]
    %v223 = vld [vmem:[#allocation2 + $0x210] sm:$0xff]
    %v224 = vld [vmem:[#allocation2 + $0x218] sm:$0xff]
    %v225 = vld [vmem:[#allocation2 + $0x220] sm:$0xff]
    %v226 = vld [vmem:[#allocation2 + $0x228] sm:$0xff]
    %v227 = vld [vmem:[#allocation2 + $0x230] sm:$0xff]
    %v228 = vld [vmem:[#allocation2 + $0x238] sm:$0xff]
    %v229 = vld [vmem:[#allocation2 + $0x240] sm:$0xff]
    %v230 = vld [vmem:[#allocation2 + $0x248] sm:$0xff]
    %v231 = vld [vmem:[#allocation2 + $0x250] sm:$0xff]
    %v232 = vld [vmem:[#allocation2 + $0x258] sm:$0xff]
    %v233 = vld [vmem:[#allocation2 + $0x260] sm:$0xff]
    %v234 = vld [vmem:[#allocation2 + $0x268] sm:$0xff]
    %v235 = vld [vmem:[#allocation2 + $0x270] sm:$0xff]
    %v236 = vld [vmem:[#allocation2 + $0x278] sm:$0xff]
    %v237 = vld [vmem:[#allocation2 + $0x280] sm:$0xff]
    %v238 = vld [vmem:[#allocation2 + $0x288] sm:$0xff]
    %v239 = vld [vmem:[#allocation2 + $0x290] sm:$0xff]
    %v240 = vld [vmem:[#allocation2 + $0x298] sm:$0xff]
    %v241 = vld [vmem:[#allocation2 + $0x2a0] sm:$0xff]
    %v242 = vld [vmem:[#allocation2 + $0x2a8] sm:$0xff]
    %v243 = vld [vmem:[#allocation2 + $0x2b0] sm:$0xff]
    %v244 = vld [vmem:[#allocation2 + $0x2b8] sm:$0xff]
    %v245 = vld [vmem:[#allocation2 + $0x2c0] sm:$0xff]
    %v246 = vld [vmem:[#allocation2 + $0x2c8] sm:$0xff]
    %v247 = vld [vmem:[#allocation2 + $0x2d0] sm:$0xff]
    %v248 = vld [vmem:[#allocation2 + $0x2d8] sm:$0xff]
    %v249 = vld [vmem:[#allocation2 + $0x2e0] sm:$0xff]
    %v250 = vld [vmem:[#allocation2 + $0x2e8] sm:$0xff]
    %v251 = vld [vmem:[#allocation2 + $0x2f0] sm:$0xff]
    %v252 = vld [vmem:[#allocation2 + $0x2f8] sm:$0xff]
    %v253 = vld [vmem:[#allocation2 + $0x300] sm:$0xff]
    %v254 = vld [vmem:[#allocation2 + $0x308] sm:$0xff]
    %v255 = vld [vmem:[#allocation2 + $0x310] sm:$0xff]
    %v256 = vld [vmem:[#allocation2 + $0x318] sm:$0xff]
    %v257 = vld [vmem:[#allocation2 + $0x320] sm:$0xff]
    %v258 = vld [vmem:[#allocation2 + $0x328] sm:$0xff]
    %v259 = vld [vmem:[#allocation2 + $0x330] sm:$0xff]
    %v260 = vld [vmem:[#allocation2 + $0x338] sm:$0xff]
    %v261 = vld [vmem:[#allocation2 + $0x340] sm:$0xff]
    %v262 = vld [vmem:[#allocation2 + $0x348] sm:$0xff]
    %v263 = vld [vmem:[#allocation2 + $0x350] sm:$0xff]
    %v264 = vld [vmem:[#allocation2 + $0x358] sm:$0xff]
    %v265 = vld [vmem:[#allocation2 + $0x360] sm:$0xff]
    %v266 = vld [vmem:[#allocation2 + $0x368] sm:$0xff]
    %v267 = vld [vmem:[#allocation2 + $0x370] sm:$0xff]
    %v268 = vld [vmem:[#allocation2 + $0x378] sm:$0xff]
    %v269 = vld [vmem:[#allocation2 + $0x380] sm:$0xff]
    %v270 = vld [vmem:[#allocation2 + $0x388] sm:$0xff]
    %v271 = vld [vmem:[#allocation2 + $0x390] sm:$0xff]
    %v272 = vld [vmem:[#allocation2 + $0x398] sm:$0xff]
    %v273 = vld [vmem:[#allocation2 + $0x3a0] sm:$0xff]
    %v274 = vld [vmem:[#allocation2 + $0x3a8] sm:$0xff]
    %v275 = vld [vmem:[#allocation2 + $0x3b0] sm:$0xff]
    %v276 = vld [vmem:[#allocation2 + $0x3b8] sm:$0xff]
    %v277 = vld [vmem:[#allocation2 + $0x3c0] sm:$0xff]
    %v278 = vld [vmem:[#allocation2 + $0x3c8] sm:$0xff]
    %v279 = vld [vmem:[#allocation2 + $0x3d0] sm:$0xff]
    %v280 = vld [vmem:[#allocation2 + $0x3d8] sm:$0xff]
    %v281 = vld [vmem:[#allocation2 + $0x3e0] sm:$0xff]
    %v282 = vld [vmem:[#allocation2 + $0x3e8] sm:$0xff]
    %v283 = vld [vmem:[#allocation2 + $0x3f0] sm:$0xff]
    %v284 = vld [vmem:[#allocation2 + $0x3f8] sm:$0xff]
    %v285 = vld [vmem:[#allocation2 + $0x400] sm:$0xff]
    %v286 = vld [vmem:[#allocation2 + $0x408] sm:$0xff]
    %v287 = vld [vmem:[#allocation2 + $0x410] sm:$0xff]
    %v288 = vld [vmem:[#allocation2 + $0x418] sm:$0xff]
    %v289 = vld [vmem:[#allocation2 + $0x420] sm:$0xff]
    %v290 = vld [vmem:[#allocation2 + $0x428] sm:$0xff]
    %v291 = vld [vmem:[#allocation2 + $0x430] sm:$0xff]
    %v292 = vld [vmem:[#allocation2 + $0x438] sm:$0xff]
    %v293 = vld [vmem:[#allocation2 + $0x440] sm:$0xff]
    %v294 = vld [vmem:[#allocation2 + $0x448] sm:$0xff]
    %v295 = vld [vmem:[#allocation2 + $0x450] sm:$0xff]
    %v296 = vld [vmem:[#allocation2 + $0x458] sm:$0xff]
    %v297 = vld [vmem:[#allocation2 + $0x460] sm:$0xff]
    %v298 = vld [vmem:[#allocation2 + $0x468] sm:$0xff]
    %v299 = vld [vmem:[#allocation2 + $0x470] sm:$0xff]
    %v300 = vld [vmem:[#allocation2 + $0x478] sm:$0xff]
    %v301 = vld [vmem:[#allocation2 + $0x480] sm:$0xff]
    %v302 = vld [vmem:[#allocation2 + $0x488] sm:$0xff]
    %v303 = vld [vmem:[#allocation2 + $0x490] sm:$0xff]
    %v304 = vld [vmem:[#allocation2 + $0x498] sm:$0xff]
    %v305 = vld [vmem:[#allocation2 + $0x4a0] sm:$0xff]
    %v306 = vld [vmem:[#allocation2 + $0x4a8] sm:$0xff]
    %v307 = vld [vmem:[#allocation2 + $0x4b0] sm:$0xff]
    %v308 = vld [vmem:[#allocation2 + $0x4b8] sm:$0xff]
    %v309 = vld [vmem:[#allocation2 + $0x4c0] sm:$0xff]
    %v310 = vld [vmem:[#allocation2 + $0x4c8] sm:$0xff]
    %v311 = vld [vmem:[#allocation2 + $0x4d0] sm:$0xff]
    %v312 = vld [vmem:[#allocation2 + $0x4d8] sm:$0xff]
    %v313 = vld [vmem:[#allocation2 + $0x4e0] sm:$0xff]
    %v314 = vld [vmem:[#allocation2 + $0x4e8] sm:$0xff]
    %v315 = vld [vmem:[#allocation2 + $0x4f0] sm:$0xff]
    %v316 = vld [vmem:[#allocation2 + $0x4f8] sm:$0xff]
    %v317 = vld [vmem:[#allocation2 + $0x500] sm:$0xff]
    %v318 = vld [vmem:[#allocation2 + $0x508] sm:$0xff]
    %v319 = vld [vmem:[#allocation2 + $0x510] sm:$0xff]
    %v320 = vld [vmem:[#allocation2 + $0x518] sm:$0xff]
    %v321 = vld [vmem:[#allocation2 + $0x520] sm:$0xff]
    %v322 = vld [vmem:[#allocation2 + $0x528] sm:$0xff]
    %v323 = vld [vmem:[#allocation2 + $0x530] sm:$0xff]
    %v324 = vld [vmem:[#allocation2 + $0x538] sm:$0xff]
    %v325 = vld [vmem:[#allocation2 + $0x540] sm:$0xff]
    %v326 = vld [vmem:[#allocation2 + $0x548] sm:$0xff]
    %v327 = vld [vmem:[#allocation2 + $0x550] sm:$0xff]
    %v328 = vld [vmem:[#allocation2 + $0x558] sm:$0xff]
    %v329 = vld [vmem:[#allocation2 + $0x560] sm:$0xff]
    %v330 = vld [vmem:[#allocation2 + $0x568] sm:$0xff]
    %v331 = vld [vmem:[#allocation2 + $0x570] sm:$0xff]
    %v332 = vld [vmem:[#allocation2 + $0x578] sm:$0xff]
    %v333 = vld [vmem:[#allocation2 + $0x580] sm:$0xff]
    %v334 = vld [vmem:[#allocation2 + $0x588] sm:$0xff]
    %v335 = vld [vmem:[#allocation2 + $0x590] sm:$0xff]
    %v336 = vld [vmem:[#allocation2 + $0x598] sm:$0xff]
    %v337 = vld [vmem:[#allocation2 + $0x5a0] sm:$0xff]
    %v338 = vld [vmem:[#allocation2 + $0x5a8] sm:$0xff]
    %v339 = vld [vmem:[#allocation2 + $0x5b0] sm:$0xff]
    %v340 = vld [vmem:[#allocation2 + $0x5b8] sm:$0xff]
    %v341 = vld [vmem:[#allocation2 + $0x5c0] sm:$0xff]
    %v342 = vld [vmem:[#allocation2 + $0x5c8] sm:$0xff]
    %v343 = vld [vmem:[#allocation2 + $0x5d0] sm:$0xff]
    %v344 = vld [vmem:[#allocation2 + $0x5d8] sm:$0xff]
    %v345 = vld [vmem:[#allocation2 + $0x5e0] sm:$0xff]
    %v346 = vld [vmem:[#allocation2 + $0x5e8] sm:$0xff]
    %v347 = vld [vmem:[#allocation2 + $0x5f0] sm:$0xff]
    %v348 = vld [vmem:[#allocation2 + $0x5f8] sm:$0xff]
    %v349 = vld [vmem:[#allocation2 + $0x600] sm:$0xff]
    %v350 = vld [vmem:[#allocation2 + $0x608] sm:$0xff]
    %v351 = vld [vmem:[#allocation2 + $0x610] sm:$0xff]
    %v352 = vld [vmem:[#allocation2 + $0x618] sm:$0xff]
    %v353 = vld [vmem:[%s2] sm:$0xf]
    %v355 = vlaneseq
    %v356 = vshrl.u32 %v355, 7
    %v357 = vsub.s32 0, %v356
    %v358 = vrot.slane %v353, %v357
    %v359 = vlaneseq
    %v360 = vshrl.u32 %v359, 7
    %v361 = vsub.s32 1, %v360
    %v362 = vrot.slane %v353, %v361
    %v363 = vlaneseq
    %v364 = vshrl.u32 %v363, 7
    %v365 = vsub.s32 2, %v364
    %v366 = vrot.slane %v353, %v365
    %v367 = vlaneseq
    %v368 = vshrl.u32 %v367, 7
    %v369 = vsub.s32 3, %v368
    %v370 = vrot.slane %v353, %v369
    %v571 = vunpack.c.l.b16 %v157
    %v572 = vunpack.c.h.b16 %v157
    %v573 = vunpack.c.l.b16 %v158
    %v574 = vunpack.c.h.b16 %v158
    %v575 = vunpack.c.l.b16 %v159
    %v576 = vunpack.c.h.b16 %v159
    %v577 = vunpack.c.l.b16 %v160
    %v578 = vunpack.c.h.b16 %v160
    %v579 = vunpack.c.l.b16 %v161
    %v580 = vunpack.c.h.b16 %v161
    %v581 = vunpack.c.l.b16 %v162
    %v582 = vunpack.c.h.b16 %v162
    %v583 = vunpack.c.l.b16 %v163
    %v584 = vunpack.c.h.b16 %v163
    %v585 = vunpack.c.l.b16 %v164
    %v586 = vunpack.c.h.b16 %v164
    %v587 = vunpack.c.l.b16 %v165
    %v588 = vunpack.c.h.b16 %v165
    %v589 = vunpack.c.l.b16 %v166
    %v590 = vunpack.c.h.b16 %v166
    %v591 = vunpack.c.l.b16 %v167
    %v592 = vunpack.c.h.b16 %v167
    %v593 = vunpack.c.l.b16 %v168
    %v594 = vunpack.c.h.b16 %v168
    %v595 = vunpack.c.l.b16 %v169
    %v596 = vunpack.c.h.b16 %v169
    %v597 = vunpack.c.l.b16 %v170
    %v598 = vunpack.c.h.b16 %v170
    %v599 = vunpack.c.l.b16 %v171
    %v600 = vunpack.c.h.b16 %v171
    %v601 = vunpack.c.l.b16 %v172
    %v602 = vunpack.c.h.b16 %v172
    %v603 = vunpack.c.l.b16 %v173
    %v604 = vunpack.c.h.b16 %v173
    %v605 = vunpack.c.l.b16 %v174
    %v606 = vunpack.c.h.b16 %v174
    %v607 = vunpack.c.l.b16 %v175
    %v608 = vunpack.c.h.b16 %v175
    %v609 = vunpack.c.l.b16 %v176
    %v610 = vunpack.c.h.b16 %v176
    %v611 = vunpack.c.l.b16 %v177
    %v612 = vunpack.c.h.b16 %v177
    %v613 = vunpack.c.l.b16 %v178
    %v614 = vunpack.c.h.b16 %v178
    %v615 = vunpack.c.l.b16 %v179
    %v616 = vunpack.c.h.b16 %v179
    %v617 = vunpack.c.l.b16 %v180
    %v618 = vunpack.c.h.b16 %v180
    %v619 = vunpack.c.l.b16 %v181
    %v620 = vunpack.c.h.b16 %v181
    %v621 = vunpack.c.l.b16 %v182
    %v622 = vunpack.c.h.b16 %v182
    %v623 = vunpack.c.l.b16 %v183
    %v624 = vunpack.c.h.b16 %v183
    %v625 = vunpack.c.l.b16 %v184
    %v626 = vunpack.c.h.b16 %v184
    %v627 = vunpack.c.l.b16 %v185
    %v628 = vunpack.c.h.b16 %v185
    %v629 = vunpack.c.l.b16 %v186
    %v630 = vunpack.c.h.b16 %v186
    %v631 = vunpack.c.l.b16 %v187
    %v632 = vunpack.c.h.b16 %v187
    %v633 = vunpack.c.l.b16 %v188
    %v634 = vunpack.c.h.b16 %v188
    %v635 = vunpack.c.l.b16 %v189
    %v636 = vunpack.c.h.b16 %v189
    %v637 = vunpack.c.l.b16 %v190
    %v638 = vunpack.c.h.b16 %v190
    %v639 = vunpack.c.l.b16 %v191
    %v640 = vunpack.c.h.b16 %v191
    %v641 = vunpack.c.l.b16 %v192
    %v642 = vunpack.c.h.b16 %v192
    %v643 = vunpack.c.l.b16 %v193
    %v644 = vunpack.c.h.b16 %v193
    %v645 = vunpack.c.l.b16 %v194
    %v646 = vunpack.c.h.b16 %v194
    %v647 = vunpack.c.l.b16 %v195
    %v648 = vunpack.c.h.b16 %v195
    %v649 = vunpack.c.l.b16 %v196
    %v650 = vunpack.c.h.b16 %v196
    %v651 = vunpack.c.l.b16 %v197
    %v652 = vunpack.c.h.b16 %v197
    %v653 = vunpack.c.l.b16 %v198
    %v654 = vunpack.c.h.b16 %v198
    %v655 = vunpack.c.l.b16 %v199
    %v656 = vunpack.c.h.b16 %v199
    %v657 = vunpack.c.l.b16 %v200
    %v658 = vunpack.c.h.b16 %v200
    %v659 = vunpack.c.l.b16 %v201
    %v660 = vunpack.c.h.b16 %v201
    %v661 = vunpack.c.l.b16 %v202
    %v662 = vunpack.c.h.b16 %v202
    %v663 = vunpack.c.l.b16 %v203
    %v664 = vunpack.c.h.b16 %v203
    %v665 = vunpack.c.l.b16 %v204
    %v666 = vunpack.c.h.b16 %v204
    %v667 = vunpack.c.l.b16 %v205
    %v668 = vunpack.c.h.b16 %v205
    %v669 = vunpack.c.l.b16 %v206
    %v670 = vunpack.c.h.b16 %v206
    %v671 = vunpack.c.l.b16 %v207
    %v672 = vunpack.c.h.b16 %v207
    %v673 = vunpack.c.l.b16 %v208
    %v674 = vunpack.c.h.b16 %v208
    %v675 = vunpack.c.l.b16 %v209
    %v676 = vunpack.c.h.b16 %v209
    %v677 = vunpack.c.l.b16 %v210
    %v678 = vunpack.c.h.b16 %v210
    %v679 = vunpack.c.l.b16 %v211
    %v680 = vunpack.c.h.b16 %v211
    %v681 = vunpack.c.l.b16 %v212
    %v682 = vunpack.c.h.b16 %v212
    %v683 = vunpack.c.l.b16 %v213
    %v684 = vunpack.c.h.b16 %v213
    %v685 = vunpack.c.l.b16 %v214
    %v686 = vunpack.c.h.b16 %v214
    %v687 = vunpack.c.l.b16 %v215
    %v688 = vunpack.c.h.b16 %v215
    %v689 = vunpack.c.l.b16 %v216
    %v690 = vunpack.c.h.b16 %v216
    %v691 = vunpack.c.l.b16 %v217
    %v692 = vunpack.c.h.b16 %v217
    %v693 = vunpack.c.l.b16 %v218
    %v694 = vunpack.c.h.b16 %v218
    %v695 = vunpack.c.l.b16 %v219
    %v696 = vunpack.c.h.b16 %v219
    %v697 = vunpack.c.l.b16 %v220
    %v698 = vunpack.c.h.b16 %v220
    %v699 = vunpack.c.l.b16 %v221
    %v700 = vunpack.c.h.b16 %v221
    %v701 = vunpack.c.l.b16 %v222
    %v702 = vunpack.c.h.b16 %v222
    %v703 = vunpack.c.l.b16 %v223
    %v704 = vunpack.c.h.b16 %v223
    %v705 = vunpack.c.l.b16 %v224
    %v706 = vunpack.c.h.b16 %v224
    %v707 = vunpack.c.l.b16 %v225
    %v708 = vunpack.c.h.b16 %v225
    %v709 = vunpack.c.l.b16 %v226
    %v710 = vunpack.c.h.b16 %v226
    %v711 = vunpack.c.l.b16 %v227
    %v712 = vunpack.c.h.b16 %v227
    %v713 = vunpack.c.l.b16 %v228
    %v714 = vunpack.c.h.b16 %v228
    %v715 = vunpack.c.l.b16 %v229
    %v716 = vunpack.c.h.b16 %v229
    %v717 = vunpack.c.l.b16 %v230
    %v718 = vunpack.c.h.b16 %v230
    %v719 = vunpack.c.l.b16 %v231
    %v720 = vunpack.c.h.b16 %v231
    %v721 = vunpack.c.l.b16 %v232
    %v722 = vunpack.c.h.b16 %v232
    %v723 = vunpack.c.l.b16 %v233
    %v724 = vunpack.c.h.b16 %v233
    %v725 = vunpack.c.l.b16 %v234
    %v726 = vunpack.c.h.b16 %v234
    %v727 = vunpack.c.l.b16 %v235
    %v728 = vunpack.c.h.b16 %v235
    %v729 = vunpack.c.l.b16 %v236
    %v730 = vunpack.c.h.b16 %v236
    %v731 = vunpack.c.l.b16 %v237
    %v732 = vunpack.c.h.b16 %v237
    %v733 = vunpack.c.l.b16 %v238
    %v734 = vunpack.c.h.b16 %v238
    %v735 = vunpack.c.l.b16 %v239
    %v736 = vunpack.c.h.b16 %v239
    %v737 = vunpack.c.l.b16 %v240
    %v738 = vunpack.c.h.b16 %v240
    %v739 = vunpack.c.l.b16 %v241
    %v740 = vunpack.c.h.b16 %v241
    %v741 = vunpack.c.l.b16 %v242
    %v742 = vunpack.c.h.b16 %v242
    %v743 = vunpack.c.l.b16 %v243
    %v744 = vunpack.c.h.b16 %v243
    %v745 = vunpack.c.l.b16 %v244
    %v746 = vunpack.c.h.b16 %v244
    %v747 = vunpack.c.l.b16 %v245
    %v748 = vunpack.c.h.b16 %v245
    %v749 = vunpack.c.l.b16 %v246
    %v750 = vunpack.c.h.b16 %v246
    %v751 = vunpack.c.l.b16 %v247
    %v752 = vunpack.c.h.b16 %v247
    %v753 = vunpack.c.l.b16 %v248
    %v754 = vunpack.c.h.b16 %v248
    %v755 = vunpack.c.l.b16 %v249
    %v756 = vunpack.c.h.b16 %v249
    %v757 = vunpack.c.l.b16 %v250
    %v758 = vunpack.c.h.b16 %v250
    %v759 = vunpack.c.l.b16 %v251
    %v760 = vunpack.c.h.b16 %v251
    %v761 = vunpack.c.l.b16 %v252
    %v762 = vunpack.c.h.b16 %v252
    %v763 = vunpack.c.l.b16 %v253
    %v764 = vunpack.c.h.b16 %v253
    %v765 = vunpack.c.l.b16 %v254
    %v766 = vunpack.c.h.b16 %v254
    %v767 = vunpack.c.l.b16 %v255
    %v768 = vunpack.c.h.b16 %v255
    %v769 = vunpack.c.l.b16 %v256
    %v770 = vunpack.c.h.b16 %v256
    %v771 = vunpack.c.l.b16 %v257
    %v772 = vunpack.c.h.b16 %v257
    %v773 = vunpack.c.l.b16 %v258
    %v774 = vunpack.c.h.b16 %v258
    %v775 = vunpack.c.l.b16 %v259
    %v776 = vunpack.c.h.b16 %v259
    %v777 = vunpack.c.l.b16 %v260
    %v778 = vunpack.c.h.b16 %v260
    %v779 = vunpack.c.l.b16 %v261
    %v780 = vunpack.c.h.b16 %v261
    %v781 = vunpack.c.l.b16 %v262
    %v782 = vunpack.c.h.b16 %v262
    %v783 = vunpack.c.l.b16 %v263
    %v784 = vunpack.c.h.b16 %v263
    %v785 = vunpack.c.l.b16 %v264
    %v786 = vunpack.c.h.b16 %v264
    %v787 = vunpack.c.l.b16 %v265
    %v788 = vunpack.c.h.b16 %v265
    %v789 = vunpack.c.l.b16 %v266
    %v790 = vunpack.c.h.b16 %v266
    %v791 = vunpack.c.l.b16 %v267
    %v792 = vunpack.c.h.b16 %v267
    %v793 = vunpack.c.l.b16 %v268
    %v794 = vunpack.c.h.b16 %v268
    %v795 = vunpack.c.l.b16 %v269
    %v796 = vunpack.c.h.b16 %v269
    %v797 = vunpack.c.l.b16 %v270
    %v798 = vunpack.c.h.b16 %v270
    %v799 = vunpack.c.l.b16 %v271
    %v800 = vunpack.c.h.b16 %v271
    %v801 = vunpack.c.l.b16 %v272
    %v802 = vunpack.c.h.b16 %v272
    %v803 = vunpack.c.l.b16 %v273
    %v804 = vunpack.c.h.b16 %v273
    %v805 = vunpack.c.l.b16 %v274
    %v806 = vunpack.c.h.b16 %v274
    %v807 = vunpack.c.l.b16 %v275
    %v808 = vunpack.c.h.b16 %v275
    %v809 = vunpack.c.l.b16 %v276
    %v810 = vunpack.c.h.b16 %v276
    %v811 = vunpack.c.l.b16 %v277
    %v812 = vunpack.c.h.b16 %v277
    %v813 = vunpack.c.l.b16 %v278
    %v814 = vunpack.c.h.b16 %v278
    %v815 = vunpack.c.l.b16 %v279
    %v816 = vunpack.c.h.b16 %v279
    %v817 = vunpack.c.l.b16 %v280
    %v818 = vunpack.c.h.b16 %v280
    %v819 = vunpack.c.l.b16 %v281
    %v820 = vunpack.c.h.b16 %v281
    %v821 = vunpack.c.l.b16 %v282
    %v822 = vunpack.c.h.b16 %v282
    %v823 = vunpack.c.l.b16 %v283
    %v824 = vunpack.c.h.b16 %v283
    %v825 = vunpack.c.l.b16 %v284
    %v826 = vunpack.c.h.b16 %v284
    %v827 = vunpack.c.l.b16 %v285
    %v828 = vunpack.c.h.b16 %v285
    %v829 = vunpack.c.l.b16 %v286
    %v830 = vunpack.c.h.b16 %v286
    %v831 = vunpack.c.l.b16 %v287
    %v832 = vunpack.c.h.b16 %v287
    %v833 = vunpack.c.l.b16 %v288
    %v834 = vunpack.c.h.b16 %v288
    %v835 = vunpack.c.l.b16 %v289
    %v836 = vunpack.c.h.b16 %v289
    %v837 = vunpack.c.l.b16 %v290
    %v838 = vunpack.c.h.b16 %v290
    %v839 = vunpack.c.l.b16 %v291
    %v840 = vunpack.c.h.b16 %v291
    %v841 = vunpack.c.l.b16 %v292
    %v842 = vunpack.c.h.b16 %v292
    %v843 = vunpack.c.l.b16 %v293
    %v844 = vunpack.c.h.b16 %v293
    %v845 = vunpack.c.l.b16 %v294
    %v846 = vunpack.c.h.b16 %v294
    %v847 = vunpack.c.l.b16 %v295
    %v848 = vunpack.c.h.b16 %v295
    %v849 = vunpack.c.l.b16 %v296
    %v850 = vunpack.c.h.b16 %v296
    %v851 = vunpack.c.l.b16 %v297
    %v852 = vunpack.c.h.b16 %v297
    %v853 = vunpack.c.l.b16 %v298
    %v854 = vunpack.c.h.b16 %v298
    %v855 = vunpack.c.l.b16 %v299
    %v856 = vunpack.c.h.b16 %v299
    %v857 = vunpack.c.l.b16 %v300
    %v858 = vunpack.c.h.b16 %v300
    %v859 = vunpack.c.l.b16 %v301
    %v860 = vunpack.c.h.b16 %v301
    %v861 = vunpack.c.l.b16 %v302
    %v862 = vunpack.c.h.b16 %v302
    %v863 = vunpack.c.l.b16 %v303
    %v864 = vunpack.c.h.b16 %v303
    %v865 = vunpack.c.l.b16 %v304
    %v866 = vunpack.c.h.b16 %v304
    %v867 = vunpack.c.l.b16 %v305
    %v868 = vunpack.c.h.b16 %v305
    %v869 = vunpack.c.l.b16 %v306
    %v870 = vunpack.c.h.b16 %v306
    %v871 = vunpack.c.l.b16 %v307
    %v872 = vunpack.c.h.b16 %v307
    %v873 = vunpack.c.l.b16 %v308
    %v874 = vunpack.c.h.b16 %v308
    %v875 = vunpack.c.l.b16 %v309
    %v876 = vunpack.c.h.b16 %v309
    %v877 = vunpack.c.l.b16 %v310
    %v878 = vunpack.c.h.b16 %v310
    %v879 = vunpack.c.l.b16 %v311
    %v880 = vunpack.c.h.b16 %v311
    %v881 = vunpack.c.l.b16 %v312
    %v882 = vunpack.c.h.b16 %v312
    %v883 = vunpack.c.l.b16 %v313
    %v884 = vunpack.c.h.b16 %v313
    %v885 = vunpack.c.l.b16 %v314
    %v886 = vunpack.c.h.b16 %v314
    %v887 = vunpack.c.l.b16 %v315
    %v888 = vunpack.c.h.b16 %v315
    %v889 = vunpack.c.l.b16 %v316
    %v890 = vunpack.c.h.b16 %v316
    %v891 = vunpack.c.l.b16 %v317
    %v892 = vunpack.c.h.b16 %v317
    %v893 = vunpack.c.l.b16 %v318
    %v894 = vunpack.c.h.b16 %v318
    %v895 = vunpack.c.l.b16 %v319
    %v896 = vunpack.c.h.b16 %v319
    %v897 = vunpack.c.l.b16 %v320
    %v898 = vunpack.c.h.b16 %v320
    %v899 = vunpack.c.l.b16 %v321
    %v900 = vunpack.c.h.b16 %v321
    %v901 = vunpack.c.l.b16 %v322
    %v902 = vunpack.c.h.b16 %v322
    %v903 = vunpack.c.l.b16 %v323
    %v904 = vunpack.c.h.b16 %v323
    %v905 = vunpack.c.l.b16 %v324
    %v906 = vunpack.c.h.b16 %v324
    %v907 = vunpack.c.l.b16 %v325
    %v908 = vunpack.c.h.b16 %v325
    %v909 = vunpack.c.l.b16 %v326
    %v910 = vunpack.c.h.b16 %v326
    %v911 = vunpack.c.l.b16 %v327
    %v912 = vunpack.c.h.b16 %v327
    %v913 = vunpack.c.l.b16 %v328
    %v914 = vunpack.c.h.b16 %v328
    %v915 = vunpack.c.l.b16 %v329
    %v916 = vunpack.c.h.b16 %v329
    %v917 = vunpack.c.l.b16 %v330
    %v918 = vunpack.c.h.b16 %v330
    %v919 = vunpack.c.l.b16 %v331
    %v920 = vunpack.c.h.b16 %v331
    %v921 = vunpack.c.l.b16 %v332
    %v922 = vunpack.c.h.b16 %v332
    %v923 = vunpack.c.l.b16 %v333
    %v924 = vunpack.c.h.b16 %v333
    %v925 = vunpack.c.l.b16 %v334
    %v926 = vunpack.c.h.b16 %v334
    %v927 = vunpack.c.l.b16 %v335
    %v928 = vunpack.c.h.b16 %v335
    %v929 = vunpack.c.l.b16 %v336
    %v930 = vunpack.c.h.b16 %v336
    %v931 = vunpack.c.l.b16 %v337
    %v932 = vunpack.c.h.b16 %v337
    %v933 = vunpack.c.l.b16 %v338
    %v934 = vunpack.c.h.b16 %v338
    %v935 = vunpack.c.l.b16 %v339
    %v936 = vunpack.c.h.b16 %v339
    %v937 = vunpack.c.l.b16 %v340
    %v938 = vunpack.c.h.b16 %v340
    %v939 = vunpack.c.l.b16 %v341
    %v940 = vunpack.c.h.b16 %v341
    %v941 = vunpack.c.l.b16 %v342
    %v942 = vunpack.c.h.b16 %v342
    %v943 = vunpack.c.l.b16 %v343
    %v944 = vunpack.c.h.b16 %v343
    %v945 = vunpack.c.l.b16 %v344
    %v946 = vunpack.c.h.b16 %v344
    %v947 = vunpack.c.l.b16 %v345
    %v948 = vunpack.c.h.b16 %v345
    %v949 = vunpack.c.l.b16 %v346
    %v950 = vunpack.c.h.b16 %v346
    %v951 = vunpack.c.l.b16 %v347
    %v952 = vunpack.c.h.b16 %v347
    %v953 = vunpack.c.l.b16 %v348
    %v954 = vunpack.c.h.b16 %v348
    %v955 = vunpack.c.l.b16 %v349
    %v956 = vunpack.c.h.b16 %v349
    %v957 = vunpack.c.l.b16 %v350
    %v958 = vunpack.c.h.b16 %v350
    %v959 = vunpack.c.l.b16 %v351
    %v960 = vunpack.c.h.b16 %v351
    %v961 = vunpack.c.l.b16 %v352
    %v962 = vunpack.c.h.b16 %v352
    %v963 = vpack.c.b16 %v575, %v571
    %v964 = vpack.c.b16 %v576, %v572
    %v965 = vpack.c.b16 %v577, %v573
    %v966 = vpack.c.b16 %v578, %v574
    %v967 = vpack.c.b16 %v583, %v579
    %v968 = vpack.c.b16 %v584, %v580
    %v969 = vpack.c.b16 %v585, %v581
    %v970 = vpack.c.b16 %v586, %v582
    %v971 = vpack.c.b16 %v591, %v587
    %v972 = vpack.c.b16 %v592, %v588
    %v973 = vpack.c.b16 %v593, %v589
    %v974 = vpack.c.b16 %v594, %v590
    %v975 = vpack.c.b16 %v599, %v595
    %v976 = vpack.c.b16 %v600, %v596
    %v977 = vpack.c.b16 %v601, %v597
    %v978 = vpack.c.b16 %v602, %v598
    %v979 = vpack.c.b16 %v607, %v603
    %v980 = vpack.c.b16 %v608, %v604
    %v981 = vpack.c.b16 %v609, %v605
    %v982 = vpack.c.b16 %v610, %v606
    %v983 = vpack.c.b16 %v615, %v611
    %v984 = vpack.c.b16 %v616, %v612
    %v985 = vpack.c.b16 %v617, %v613
    %v986 = vpack.c.b16 %v618, %v614
    %v987 = vpack.c.b16 %v623, %v619
    %v988 = vpack.c.b16 %v624, %v620
    %v989 = vpack.c.b16 %v625, %v621
    %v990 = vpack.c.b16 %v626, %v622
    %v991 = vpack.c.b16 %v631, %v627
    %v992 = vpack.c.b16 %v632, %v628
    %v993 = vpack.c.b16 %v633, %v629
    %v994 = vpack.c.b16 %v634, %v630
    %v995 = vpack.c.b16 %v639, %v635
    %v996 = vpack.c.b16 %v640, %v636
    %v997 = vpack.c.b16 %v641, %v637
    %v998 = vpack.c.b16 %v642, %v638
    %v999 = vpack.c.b16 %v647, %v643
    %v1000 = vpack.c.b16 %v648, %v644
    %v1001 = vpack.c.b16 %v649, %v645
    %v1002 = vpack.c.b16 %v650, %v646
    %v1003 = vpack.c.b16 %v655, %v651
    %v1004 = vpack.c.b16 %v656, %v652
    %v1005 = vpack.c.b16 %v657, %v653
    %v1006 = vpack.c.b16 %v658, %v654
    %v1007 = vpack.c.b16 %v663, %v659
    %v1008 = vpack.c.b16 %v664, %v660
    %v1009 = vpack.c.b16 %v665, %v661
    %v1010 = vpack.c.b16 %v666, %v662
    %v1011 = vpack.c.b16 %v671, %v667
    %v1012 = vpack.c.b16 %v672, %v668
    %v1013 = vpack.c.b16 %v673, %v669
    %v1014 = vpack.c.b16 %v674, %v670
    %v1015 = vpack.c.b16 %v679, %v675
    %v1016 = vpack.c.b16 %v680, %v676
    %v1017 = vpack.c.b16 %v681, %v677
    %v1018 = vpack.c.b16 %v682, %v678
    %v1019 = vpack.c.b16 %v687, %v683
    %v1020 = vpack.c.b16 %v688, %v684
    %v1021 = vpack.c.b16 %v689, %v685
    %v1022 = vpack.c.b16 %v690, %v686
    %v1023 = vpack.c.b16 %v695, %v691
    %v1024 = vpack.c.b16 %v696, %v692
    %v1025 = vpack.c.b16 %v697, %v693
    %v1026 = vpack.c.b16 %v698, %v694
    %v1027 = vpack.c.b16 %v703, %v699
    %v1028 = vpack.c.b16 %v704, %v700
    %v1029 = vpack.c.b16 %v705, %v701
    %v1030 = vpack.c.b16 %v706, %v702
    %v1031 = vpack.c.b16 %v711, %v707
    %v1032 = vpack.c.b16 %v712, %v708
    %v1033 = vpack.c.b16 %v713, %v709
    %v1034 = vpack.c.b16 %v714, %v710
    %v1035 = vpack.c.b16 %v719, %v715
    %v1036 = vpack.c.b16 %v720, %v716
    %v1037 = vpack.c.b16 %v721, %v717
    %v1038 = vpack.c.b16 %v722, %v718
    %v1039 = vpack.c.b16 %v727, %v723
    %v1040 = vpack.c.b16 %v728, %v724
    %v1041 = vpack.c.b16 %v729, %v725
    %v1042 = vpack.c.b16 %v730, %v726
    %v1043 = vpack.c.b16 %v735, %v731
    %v1044 = vpack.c.b16 %v736, %v732
    %v1045 = vpack.c.b16 %v737, %v733
    %v1046 = vpack.c.b16 %v738, %v734
    %v1047 = vpack.c.b16 %v743, %v739
    %v1048 = vpack.c.b16 %v744, %v740
    %v1049 = vpack.c.b16 %v745, %v741
    %v1050 = vpack.c.b16 %v746, %v742
    %v1051 = vpack.c.b16 %v751, %v747
    %v1052 = vpack.c.b16 %v752, %v748
    %v1053 = vpack.c.b16 %v753, %v749
    %v1054 = vpack.c.b16 %v754, %v750
    %v1055 = vpack.c.b16 %v759, %v755
    %v1056 = vpack.c.b16 %v760, %v756
    %v1057 = vpack.c.b16 %v761, %v757
    %v1058 = vpack.c.b16 %v762, %v758
    %v1059 = vpack.c.b16 %v767, %v763
    %v1060 = vpack.c.b16 %v768, %v764
    %v1061 = vpack.c.b16 %v769, %v765
    %v1062 = vpack.c.b16 %v770, %v766
    %v1063 = vpack.c.b16 %v775, %v771
    %v1064 = vpack.c.b16 %v776, %v772
    %v1065 = vpack.c.b16 %v777, %v773
    %v1066 = vpack.c.b16 %v778, %v774
    %v1067 = vpack.c.b16 %v783, %v779
    %v1068 = vpack.c.b16 %v784, %v780
    %v1069 = vpack.c.b16 %v785, %v781
    %v1070 = vpack.c.b16 %v786, %v782
    %v1071 = vpack.c.b16 %v791, %v787
    %v1072 = vpack.c.b16 %v792, %v788
    %v1073 = vpack.c.b16 %v793, %v789
    %v1074 = vpack.c.b16 %v794, %v790
    %v1075 = vpack.c.b16 %v799, %v795
    %v1076 = vpack.c.b16 %v800, %v796
    %v1077 = vpack.c.b16 %v801, %v797
    %v1078 = vpack.c.b16 %v802, %v798
    %v1079 = vpack.c.b16 %v807, %v803
    %v1080 = vpack.c.b16 %v808, %v804
    %v1081 = vpack.c.b16 %v809, %v805
    %v1082 = vpack.c.b16 %v810, %v806
    %v1083 = vpack.c.b16 %v815, %v811
    %v1084 = vpack.c.b16 %v816, %v812
    %v1085 = vpack.c.b16 %v817, %v813
    %v1086 = vpack.c.b16 %v818, %v814
    %v1087 = vpack.c.b16 %v823, %v819
    %v1088 = vpack.c.b16 %v824, %v820
    %v1089 = vpack.c.b16 %v825, %v821
    %v1090 = vpack.c.b16 %v826, %v822
    %v1091 = vpack.c.b16 %v831, %v827
    %v1092 = vpack.c.b16 %v832, %v828
    %v1093 = vpack.c.b16 %v833, %v829
    %v1094 = vpack.c.b16 %v834, %v830
    %v1095 = vpack.c.b16 %v839, %v835
    %v1096 = vpack.c.b16 %v840, %v836
    %v1097 = vpack.c.b16 %v841, %v837
    %v1098 = vpack.c.b16 %v842, %v838
    %v1099 = vpack.c.b16 %v847, %v843
    %v1100 = vpack.c.b16 %v848, %v844
    %v1101 = vpack.c.b16 %v849, %v845
    %v1102 = vpack.c.b16 %v850, %v846
    %v1103 = vpack.c.b16 %v855, %v851
    %v1104 = vpack.c.b16 %v856, %v852
    %v1105 = vpack.c.b16 %v857, %v853
    %v1106 = vpack.c.b16 %v858, %v854
    %v1107 = vpack.c.b16 %v863, %v859
    %v1108 = vpack.c.b16 %v864, %v860
    %v1109 = vpack.c.b16 %v865, %v861
    %v1110 = vpack.c.b16 %v866, %v862
    %v1111 = vpack.c.b16 %v871, %v867
    %v1112 = vpack.c.b16 %v872, %v868
    %v1113 = vpack.c.b16 %v873, %v869
    %v1114 = vpack.c.b16 %v874, %v870
    %v1115 = vpack.c.b16 %v879, %v875
    %v1116 = vpack.c.b16 %v880, %v876
    %v1117 = vpack.c.b16 %v881, %v877
    %v1118 = vpack.c.b16 %v882, %v878
    %v1119 = vpack.c.b16 %v887, %v883
    %v1120 = vpack.c.b16 %v888, %v884
    %v1121 = vpack.c.b16 %v889, %v885
    %v1122 = vpack.c.b16 %v890, %v886
    %v1123 = vpack.c.b16 %v895, %v891
    %v1124 = vpack.c.b16 %v896, %v892
    %v1125 = vpack.c.b16 %v897, %v893
    %v1126 = vpack.c.b16 %v898, %v894
    %v1127 = vpack.c.b16 %v903, %v899
    %v1128 = vpack.c.b16 %v904, %v900
    %v1129 = vpack.c.b16 %v905, %v901
    %v1130 = vpack.c.b16 %v906, %v902
    %v1131 = vpack.c.b16 %v911, %v907
    %v1132 = vpack.c.b16 %v912, %v908
    %v1133 = vpack.c.b16 %v913, %v909
    %v1134 = vpack.c.b16 %v914, %v910
    %v1135 = vpack.c.b16 %v919, %v915
    %v1136 = vpack.c.b16 %v920, %v916
    %v1137 = vpack.c.b16 %v921, %v917
    %v1138 = vpack.c.b16 %v922, %v918
    %v1139 = vpack.c.b16 %v927, %v923
    %v1140 = vpack.c.b16 %v928, %v924
    %v1141 = vpack.c.b16 %v929, %v925
    %v1142 = vpack.c.b16 %v930, %v926
    %v1143 = vpack.c.b16 %v935, %v931
    %v1144 = vpack.c.b16 %v936, %v932
    %v1145 = vpack.c.b16 %v937, %v933
    %v1146 = vpack.c.b16 %v938, %v934
    %v1147 = vpack.c.b16 %v943, %v939
    %v1148 = vpack.c.b16 %v944, %v940
    %v1149 = vpack.c.b16 %v945, %v941
    %v1150 = vpack.c.b16 %v946, %v942
    %v1151 = vpack.c.b16 %v951, %v947
    %v1152 = vpack.c.b16 %v952, %v948
    %v1153 = vpack.c.b16 %v953, %v949
    %v1154 = vpack.c.b16 %v954, %v950
    %v1155 = vpack.c.b16 %v959, %v955
    %v1156 = vpack.c.b16 %v960, %v956
    %v1157 = vpack.c.b16 %v961, %v957
    %v1158 = vpack.c.b16 %v962, %v958
    %vm1355 = vcmask 130048
    %v1357 = vsel %vm1355, %v156, 0
    %1359 = vmatprep.subr.bf16.mxu0 %v992
    %1360 = vmatpush1.bf16.msra.mxu0 %v991
    %1361 = vmatprep.subr.bf16.mxu0 %v988
    %1362 = vmatpush1.bf16.msra.mxu0 %v987
    %1363 = vmatprep.subr.bf16.mxu0 %v984
    %1364 = vmatpush1.bf16.msra.mxu0 %v983
    %1365 = vmatprep.subr.bf16.mxu0 %v980
    %1366 = vmatpush1.bf16.msra.mxu0 %v979
    %1367 = vmatprep.subr.bf16.mxu0 %v976
    %1368 = vmatpush1.bf16.msra.mxu0 %v975
    %1369 = vmatprep.subr.bf16.mxu0 %v972
    %1370 = vmatpush1.bf16.msra.mxu0 %v971
    %1371 = vmatprep.subr.bf16.mxu0 %v968
    %1372 = vmatpush1.bf16.msra.mxu0 %v967
    %1373 = vmatprep.subr.bf16.mxu0 %v964
    %1374 = vmatpush1.bf16.msra.mxu0 %v963
    %1375 = vmatprep.subr.bf16.mxu0 %v1024
    %1376 = vmatpush2.bf16.msra.mxu0 %v1023
    %1377 = vmatprep.subr.bf16.mxu0 %v1020
    %1378 = vmatpush2.bf16.msra.mxu0 %v1019
    %1379 = vmatprep.subr.bf16.mxu0 %v1016
    %1380 = vmatpush2.bf16.msra.mxu0 %v1015
    %1381 = vmatprep.subr.bf16.mxu0 %v1012
    %1382 = vmatpush2.bf16.msra.mxu0 %v1011
    %1383 = vmatprep.subr.bf16.mxu0 %v1008
    %1384 = vmatpush2.bf16.msra.mxu0 %v1007
    %1385 = vmatprep.subr.bf16.mxu0 %v1004
    %1386 = vmatpush2.bf16.msra.mxu0 %v1003
    %1387 = vmatprep.subr.bf16.mxu0 %v1000
    %1388 = vmatpush2.bf16.msra.mxu0 %v999
    %1389 = vmatprep.subr.bf16.mxu0 %v996
    %1390 = vmatpush2.bf16.msra.mxu0 %v995
    %1391 = vmatprep.mubr.bf16.mxu0 %v151
    %1392 = vmatmul.mubr.bf16.gmra.mxu0 %v150
    %v1393 = vpop.f32.mrf.mxu0
    %v1394 = vadd.f32 %v358, %v1393
    %v1395 = vpop.f32.mrf.mxu0
    %v1396 = vadd.f32 %v362, %v1395
    %v1397 = vpop.f32.mrf.mxu0
    %v1398 = vpop.f32.mrf.mxu0
    %1399 = vdwg.mxu0
    %1400 = vmatprep.subr.bf16.mxu0 %v1056
    %1401 = vmatpush1.bf16.msra.mxu0 %v1055
    %1402 = vmatprep.subr.bf16.mxu0 %v1052
    %1403 = vmatpush1.bf16.msra.mxu0 %v1051
    %1404 = vmatprep.subr.bf16.mxu0 %v1048
    %1405 = vmatpush1.bf16.msra.mxu0 %v1047
    %1406 = vmatprep.subr.bf16.mxu0 %v1044
    %1407 = vmatpush1.bf16.msra.mxu0 %v1043
    %1408 = vmatprep.subr.bf16.mxu0 %v1040
    %1409 = vmatpush1.bf16.msra.mxu0 %v1039
    %1410 = vmatprep.subr.bf16.mxu0 %v1036
    %1411 = vmatpush1.bf16.msra.mxu0 %v1035
    %1412 = vmatprep.subr.bf16.mxu0 %v1032
    %1413 = vmatpush1.bf16.msra.mxu0 %v1031
    %1414 = vmatprep.subr.bf16.mxu0 %v1028
    %1415 = vmatpush1.bf16.msra.mxu0 %v1027
    %1416 = vmatprep.subr.bf16.mxu0 %v1088
    %1417 = vmatpush2.bf16.msra.mxu0 %v1087
    %1418 = vmatprep.subr.bf16.mxu0 %v1084
    %1419 = vmatpush2.bf16.msra.mxu0 %v1083
    %1420 = vmatprep.subr.bf16.mxu0 %v1080
    %1421 = vmatpush2.bf16.msra.mxu0 %v1079
    %1422 = vmatprep.subr.bf16.mxu0 %v1076
    %1423 = vmatpush2.bf16.msra.mxu0 %v1075
    %1424 = vmatprep.subr.bf16.mxu0 %v1072
    %1425 = vmatpush2.bf16.msra.mxu0 %v1071
    %1426 = vmatprep.subr.bf16.mxu0 %v1068
    %1427 = vmatpush2.bf16.msra.mxu0 %v1067
    %1428 = vmatprep.subr.bf16.mxu0 %v1064
    %1429 = vmatpush2.bf16.msra.mxu0 %v1063
    %1430 = vmatprep.subr.bf16.mxu0 %v1060
    %1431 = vmatpush2.bf16.msra.mxu0 %v1059
    %1432 = vmatprep.mubr.bf16.mxu0 %v153
    %1433 = vmatmul.mubr.bf16.gmra.mxu0 %v152
    %v1434 = vpop.f32.mrf.mxu0
    %v1435 = vadd.f32 %v1394, %v1434
    %v1436 = vpop.f32.mrf.mxu0
    %v1437 = vadd.f32 %v1396, %v1436
    %v1438 = vpop.f32.mrf.mxu0
    %v1439 = vpop.f32.mrf.mxu0
    %1440 = vdwg.mxu0
    %1441 = vmatprep.subr.bf16.mxu0 %v1120
    %1442 = vmatpush1.bf16.msra.mxu0 %v1119
    %1443 = vmatprep.subr.bf16.mxu0 %v1116
    %1444 = vmatpush1.bf16.msra.mxu0 %v1115
    %1445 = vmatprep.subr.bf16.mxu0 %v1112
    %1446 = vmatpush1.bf16.msra.mxu0 %v1111
    %1447 = vmatprep.subr.bf16.mxu0 %v1108
    %1448 = vmatpush1.bf16.msra.mxu0 %v1107
    %1449 = vmatprep.subr.bf16.mxu0 %v1104
    %1450 = vmatpush1.bf16.msra.mxu0 %v1103
    %1451 = vmatprep.subr.bf16.mxu0 %v1100
    %1452 = vmatpush1.bf16.msra.mxu0 %v1099
    %1453 = vmatprep.subr.bf16.mxu0 %v1096
    %1454 = vmatpush1.bf16.msra.mxu0 %v1095
    %1455 = vmatprep.subr.bf16.mxu0 %v1092
    %1456 = vmatpush1.bf16.msra.mxu0 %v1091
    %1457 = vmatprep.subr.bf16.mxu0 %v1152
    %1458 = vmatpush2.bf16.msra.mxu0 %v1151
    %1459 = vmatprep.subr.bf16.mxu0 %v1148
    %1460 = vmatpush2.bf16.msra.mxu0 %v1147
    %1461 = vmatprep.subr.bf16.mxu0 %v1144
    %1462 = vmatpush2.bf16.msra.mxu0 %v1143
    %1463 = vmatprep.subr.bf16.mxu0 %v1140
    %1464 = vmatpush2.bf16.msra.mxu0 %v1139
    %1465 = vmatprep.subr.bf16.mxu0 %v1136
    %1466 = vmatpush2.bf16.msra.mxu0 %v1135
    %1467 = vmatprep.subr.bf16.mxu0 %v1132
    %1468 = vmatpush2.bf16.msra.mxu0 %v1131
    %1469 = vmatprep.subr.bf16.mxu0 %v1128
    %1470 = vmatpush2.bf16.msra.mxu0 %v1127
    %1471 = vmatprep.subr.bf16.mxu0 %v1124
    %1472 = vmatpush2.bf16.msra.mxu0 %v1123
    %1473 = vmatprep.mubr.bf16.mxu0 %v155
    %1474 = vmatmul.mubr.bf16.gmra.mxu0 %v154
    %v1475 = vpop.f32.mrf.mxu0
    %v1476 = vadd.f32 %v1435, %v1475
    %v1477 = vpop.f32.mrf.mxu0
    %v1478 = vadd.f32 %v1437, %v1477
    %v1479 = vpop.f32.mrf.mxu0
    %v1480 = vpop.f32.mrf.mxu0
    %1481 = vdwg.mxu0
    %1482 = vmatprep.subr.bf16.mxu0 0
    %1483 = vmatpush1.bf16.msra.mxu0 0
    %1484 = vmatprep.subr.bf16.mxu0 0
    %1485 = vmatpush1.bf16.msra.mxu0 0
    %1486 = vmatprep.subr.bf16.mxu0 0
    %1487 = vmatpush1.bf16.msra.mxu0 0
    %1488 = vmatprep.subr.bf16.mxu0 0
    %1489 = vmatpush1.bf16.msra.mxu0 0
    %1490 = vmatprep.subr.bf16.mxu0 0
    %1491 = vmatpush1.bf16.msra.mxu0 0
    %1492 = vmatprep.subr.bf16.mxu0 0
    %1493 = vmatpush1.bf16.msra.mxu0 0
    %1494 = vmatprep.subr.bf16.mxu0 0
    %1495 = vmatpush1.bf16.msra.mxu0 0
    %1496 = vmatprep.subr.bf16.mxu0 %v1156
    %1497 = vmatpush1.bf16.msra.mxu0 %v1155
    %1498 = vmatprep.subr.bf16.mxu0 0
    %1499 = vmatpush2.bf16.msra.mxu0 0
    %1500 = vmatprep.subr.bf16.mxu0 0
    %1501 = vmatpush2.bf16.msra.mxu0 0
    %1502 = vmatprep.subr.bf16.mxu0 0
    %1503 = vmatpush2.bf16.msra.mxu0 0
    %1504 = vmatprep.subr.bf16.mxu0 0
    %1505 = vmatpush2.bf16.msra.mxu0 0
    %1506 = vmatprep.subr.bf16.mxu0 0
    %1507 = vmatpush2.bf16.msra.mxu0 0
    %1508 = vmatprep.subr.bf16.mxu0 0
    %1509 = vmatpush2.bf16.msra.mxu0 0
    %1510 = vmatprep.subr.bf16.mxu0 0
    %1511 = vmatpush2.bf16.msra.mxu0 0
    %1512 = vmatprep.subr.bf16.mxu0 0
    %1513 = vmatpush2.bf16.msra.mxu0 0
    %1514 = vmatprep.mubr.bf16.mxu0 0
    %1515 = vmatmul.mubr.bf16.gmra.mxu0 %v1357
    %v1516 = vpop.f32.mrf.mxu0
    %v1517 = vadd.f32 %v1476, %v1516
    %v1518 = vpop.f32.mrf.mxu0
    %v1519 = vadd.f32 %v1478, %v1518
    %v1520 = vpop.f32.mrf.mxu0
    %v1521 = vpop.f32.mrf.mxu0
    %1522 = vdwg.mxu0
    %1523 = vmatprep.subr.bf16.mxu0 %v994
    %1524 = vmatpush1.bf16.msra.mxu0 %v993
    %1525 = vmatprep.subr.bf16.mxu0 %v990
    %1526 = vmatpush1.bf16.msra.mxu0 %v989
    %1527 = vmatprep.subr.bf16.mxu0 %v986
    %1528 = vmatpush1.bf16.msra.mxu0 %v985
    %1529 = vmatprep.subr.bf16.mxu0 %v982
    %1530 = vmatpush1.bf16.msra.mxu0 %v981
    %1531 = vmatprep.subr.bf16.mxu0 %v978
    %1532 = vmatpush1.bf16.msra.mxu0 %v977
    %1533 = vmatprep.subr.bf16.mxu0 %v974
    %1534 = vmatpush1.bf16.msra.mxu0 %v973
    %1535 = vmatprep.subr.bf16.mxu0 %v970
    %1536 = vmatpush1.bf16.msra.mxu0 %v969
    %1537 = vmatprep.subr.bf16.mxu0 %v966
    %1538 = vmatpush1.bf16.msra.mxu0 %v965
    %1539 = vmatprep.subr.bf16.mxu0 %v1026
    %1540 = vmatpush2.bf16.msra.mxu0 %v1025
    %1541 = vmatprep.subr.bf16.mxu0 %v1022
    %1542 = vmatpush2.bf16.msra.mxu0 %v1021
    %1543 = vmatprep.subr.bf16.mxu0 %v1018
    %1544 = vmatpush2.bf16.msra.mxu0 %v1017
    %1545 = vmatprep.subr.bf16.mxu0 %v1014
    %1546 = vmatpush2.bf16.msra.mxu0 %v1013
    %1547 = vmatprep.subr.bf16.mxu0 %v1010
    %1548 = vmatpush2.bf16.msra.mxu0 %v1009
    %1549 = vmatprep.subr.bf16.mxu0 %v1006
    %1550 = vmatpush2.bf16.msra.mxu0 %v1005
    %1551 = vmatprep.subr.bf16.mxu0 %v1002
    %1552 = vmatpush2.bf16.msra.mxu0 %v1001
    %1553 = vmatprep.subr.bf16.mxu0 %v998
    %1554 = vmatpush2.bf16.msra.mxu0 %v997
    %1555 = vmatprep.mubr.bf16.mxu0 %v151
    %1556 = vmatmul.mubr.bf16.gmra.mxu0 %v150
    %v1557 = vpop.f32.mrf.mxu0
    %v1558 = vadd.f32 %v366, %v1557
    %v1559 = vpop.f32.mrf.mxu0
    %v1560 = vadd.f32 %v370, %v1559
    %v1561 = vpop.f32.mrf.mxu0
    %v1562 = vpop.f32.mrf.mxu0
    %1563 = vdwg.mxu0
    %1564 = vmatprep.subr.bf16.mxu0 %v1058
    %1565 = vmatpush1.bf16.msra.mxu0 %v1057
    %1566 = vmatprep.subr.bf16.mxu0 %v1054
    %1567 = vmatpush1.bf16.msra.mxu0 %v1053
    %1568 = vmatprep.subr.bf16.mxu0 %v1050
    %1569 = vmatpush1.bf16.msra.mxu0 %v1049
    %1570 = vmatprep.subr.bf16.mxu0 %v1046
    %1571 = vmatpush1.bf16.msra.mxu0 %v1045
    %1572 = vmatprep.subr.bf16.mxu0 %v1042
    %1573 = vmatpush1.bf16.msra.mxu0 %v1041
    %1574 = vmatprep.subr.bf16.mxu0 %v1038
    %1575 = vmatpush1.bf16.msra.mxu0 %v1037
    %1576 = vmatprep.subr.bf16.mxu0 %v1034
    %1577 = vmatpush1.bf16.msra.mxu0 %v1033
    %1578 = vmatprep.subr.bf16.mxu0 %v1030
    %1579 = vmatpush1.bf16.msra.mxu0 %v1029
    %1580 = vmatprep.subr.bf16.mxu0 %v1090
    %1581 = vmatpush2.bf16.msra.mxu0 %v1089
    %1582 = vmatprep.subr.bf16.mxu0 %v1086
    %1583 = vmatpush2.bf16.msra.mxu0 %v1085
    %1584 = vmatprep.subr.bf16.mxu0 %v1082
    %1585 = vmatpush2.bf16.msra.mxu0 %v1081
    %1586 = vmatprep.subr.bf16.mxu0 %v1078
    %1587 = vmatpush2.bf16.msra.mxu0 %v1077
    %1588 = vmatprep.subr.bf16.mxu0 %v1074
    %1589 = vmatpush2.bf16.msra.mxu0 %v1073
    %1590 = vmatprep.subr.bf16.mxu0 %v1070
    %1591 = vmatpush2.bf16.msra.mxu0 %v1069
    %1592 = vmatprep.subr.bf16.mxu0 %v1066
    %1593 = vmatpush2.bf16.msra.mxu0 %v1065
    %1594 = vmatprep.subr.bf16.mxu0 %v1062
    %1595 = vmatpush2.bf16.msra.mxu0 %v1061
    %1596 = vmatprep.mubr.bf16.mxu0 %v153
    %1597 = vmatmul.mubr.bf16.gmra.mxu0 %v152
    %v1598 = vpop.f32.mrf.mxu0
    %v1599 = vadd.f32 %v1558, %v1598
    %v1600 = vpop.f32.mrf.mxu0
    %v1601 = vadd.f32 %v1560, %v1600
    %v1602 = vpop.f32.mrf.mxu0
    %v1603 = vpop.f32.mrf.mxu0
    %1604 = vdwg.mxu0
    %1605 = vmatprep.subr.bf16.mxu0 %v1122
    %1606 = vmatpush1.bf16.msra.mxu0 %v1121
    %1607 = vmatprep.subr.bf16.mxu0 %v1118
    %1608 = vmatpush1.bf16.msra.mxu0 %v1117
    %1609 = vmatprep.subr.bf16.mxu0 %v1114
    %1610 = vmatpush1.bf16.msra.mxu0 %v1113
    %1611 = vmatprep.subr.bf16.mxu0 %v1110
    %1612 = vmatpush1.bf16.msra.mxu0 %v1109
    %1613 = vmatprep.subr.bf16.mxu0 %v1106
    %1614 = vmatpush1.bf16.msra.mxu0 %v1105
    %1615 = vmatprep.subr.bf16.mxu0 %v1102
    %1616 = vmatpush1.bf16.msra.mxu0 %v1101
    %1617 = vmatprep.subr.bf16.mxu0 %v1098
    %1618 = vmatpush1.bf16.msra.mxu0 %v1097
    %1619 = vmatprep.subr.bf16.mxu0 %v1094
    %1620 = vmatpush1.bf16.msra.mxu0 %v1093
    %1621 = vmatprep.subr.bf16.mxu0 %v1154
    %1622 = vmatpush2.bf16.msra.mxu0 %v1153
    %1623 = vmatprep.subr.bf16.mxu0 %v1150
    %1624 = vmatpush2.bf16.msra.mxu0 %v1149
    %1625 = vmatprep.subr.bf16.mxu0 %v1146
    %1626 = vmatpush2.bf16.msra.mxu0 %v1145
    %1627 = vmatprep.subr.bf16.mxu0 %v1142
    %1628 = vmatpush2.bf16.msra.mxu0 %v1141
    %1629 = vmatprep.subr.bf16.mxu0 %v1138
    %1630 = vmatpush2.bf16.msra.mxu0 %v1137
    %1631 = vmatprep.subr.bf16.mxu0 %v1134
    %1632 = vmatpush2.bf16.msra.mxu0 %v1133
    %1633 = vmatprep.subr.bf16.mxu0 %v1130
    %1634 = vmatpush2.bf16.msra.mxu0 %v1129
    %1635 = vmatprep.subr.bf16.mxu0 %v1126
    %1636 = vmatpush2.bf16.msra.mxu0 %v1125
    %1637 = vmatprep.mubr.bf16.mxu0 %v155
    %1638 = vmatmul.mubr.bf16.gmra.mxu0 %v154
    %v1639 = vpop.f32.mrf.mxu0
    %v1640 = vadd.f32 %v1599, %v1639
    %v1641 = vpop.f32.mrf.mxu0
    %v1642 = vadd.f32 %v1601, %v1641
    %v1643 = vpop.f32.mrf.mxu0
    %v1644 = vpop.f32.mrf.mxu0
    %1645 = vdwg.mxu0
    %1646 = vmatprep.subr.bf16.mxu0 0
    %1647 = vmatpush1.bf16.msra.mxu0 0
    %1648 = vmatprep.subr.bf16.mxu0 0
    %1649 = vmatpush1.bf16.msra.mxu0 0
    %1650 = vmatprep.subr.bf16.mxu0 0
    %1651 = vmatpush1.bf16.msra.mxu0 0
    %1652 = vmatprep.subr.bf16.mxu0 0
    %1653 = vmatpush1.bf16.msra.mxu0 0
    %1654 = vmatprep.subr.bf16.mxu0 0
    %1655 = vmatpush1.bf16.msra.mxu0 0
    %1656 = vmatprep.subr.bf16.mxu0 0
    %1657 = vmatpush1.bf16.msra.mxu0 0
    %1658 = vmatprep.subr.bf16.mxu0 0
    %1659 = vmatpush1.bf16.msra.mxu0 0
    %1660 = vmatprep.subr.bf16.mxu0 %v1158
    %1661 = vmatpush1.bf16.msra.mxu0 %v1157
    %1662 = vmatprep.subr.bf16.mxu0 0
    %1663 = vmatpush2.bf16.msra.mxu0 0
    %1664 = vmatprep.subr.bf16.mxu0 0
    %1665 = vmatpush2.bf16.msra.mxu0 0
    %1666 = vmatprep.subr.bf16.mxu0 0
    %1667 = vmatpush2.bf16.msra.mxu0 0
    %1668 = vmatprep.subr.bf16.mxu0 0
    %1669 = vmatpush2.bf16.msra.mxu0 0
    %1670 = vmatprep.subr.bf16.mxu0 0
    %1671 = vmatpush2.bf16.msra.mxu0 0
    %1672 = vmatprep.subr.bf16.mxu0 0
    %1673 = vmatpush2.bf16.msra.mxu0 0
    %1674 = vmatprep.subr.bf16.mxu0 0
    %1675 = vmatpush2.bf16.msra.mxu0 0
    %1676 = vmatprep.subr.bf16.mxu0 0
    %1677 = vmatpush2.bf16.msra.mxu0 0
    %1678 = vmatprep.mubr.bf16.mxu0 0
    %1679 = vmatmul.mubr.bf16.gmra.mxu0 %v1357
    %v1680 = vpop.f32.mrf.mxu0
    %v1681 = vadd.f32 %v1640, %v1680
    %v1682 = vpop.f32.mrf.mxu0
    %v1683 = vadd.f32 %v1642, %v1682
    %v1684 = vpop.f32.mrf.mxu0
    %v1685 = vpop.f32.mrf.mxu0
    %1686 = vdwg.mxu0
    %vm1687 = vcmp.gt.f32.partialorder %v1517, 0.0
    %vm1688 = vcmp.gt.f32.partialorder %v1519, 0.0
    %vm1689 = vcmp.gt.f32.partialorder %v1681, 0.0
    %vm1690 = vcmp.gt.f32.partialorder %v1683, 0.0
    %v1691 = vmul.f32 %v1517, 0.01
    %v1692 = vmul.f32 %v1519, 0.01
    %v1693 = vmul.f32 %v1681, 0.01
    %v1694 = vmul.f32 %v1683, 0.01
    %v1695 = vsel %vm1687, %v1517, %v1691
    %v1696 = vsel %vm1688, %v1519, %v1692
    %v1697 = vsel %vm1689, %v1681, %v1693
    %v1698 = vsel %vm1690, %v1683, %v1694
    %v1699 = vpack.c.bf16 %v1695, %v1695
    %v1700 = vpack.c.bf16 %v1696, %v1696
    %v1701 = vpack.c.bf16 %v1697, %v1697
    %v1702 = vpack.c.bf16 %v1698, %v1698
    %v1703 = vld [vmem:[#allocation5] sm:$0xf]
    %v1704 = vld [vmem:[#allocation5 + $0x4] sm:$0xf]
    %v1705 = vld [vmem:[#allocation5 + $0x8] sm:$0xf]
    %v1706 = vld [vmem:[#allocation5 + $0xc] sm:$0xf]
    %v1707 = vld [vmem:[#allocation5 + $0x10] sm:$0xf]
    %v1708 = vld [vmem:[#allocation5 + $0x14] sm:$0xf]
    %v1709 = vld [vmem:[#allocation5 + $0x18] sm:$0xf]
    %v1710 = vld [vmem:[#allocation5 + $0x1c] sm:$0xf]
    %v1711 = vld [vmem:[#allocation5 + $0x20] sm:$0xf]
    %v1712 = vld [vmem:[#allocation5 + $0x24] sm:$0xf]
    %v1713 = vld [vmem:[#allocation5 + $0x28] sm:$0xf]
    %v1714 = vld [vmem:[#allocation5 + $0x2c] sm:$0xf]
    %v1715 = vld [vmem:[#allocation5 + $0x30] sm:$0xf]
    %v1716 = vld [vmem:[#allocation5 + $0x34] sm:$0xf]
    %v1717 = vld [vmem:[#allocation5 + $0x38] sm:$0xf]
    %v1718 = vld [vmem:[#allocation5 + $0x3c] sm:$0xf]
    %v1719 = vld [vmem:[#allocation5 + $0x40] sm:$0xf]
    %v1720 = vld [vmem:[#allocation5 + $0x44] sm:$0xf]
    %v1721 = vld [vmem:[#allocation5 + $0x48] sm:$0xf]
    %v1722 = vld [vmem:[#allocation5 + $0x4c] sm:$0xf]
    %v1723 = vld [vmem:[#allocation5 + $0x50] sm:$0xf]
    %v1724 = vld [vmem:[#allocation5 + $0x54] sm:$0xf]
    %v1725 = vld [vmem:[#allocation5 + $0x58] sm:$0xf]
    %v1726 = vld [vmem:[#allocation5 + $0x5c] sm:$0xf]
    %v1727 = vld [vmem:[#allocation5 + $0x60] sm:$0xf]
    %v1728 = vld [vmem:[#allocation5 + $0x64] sm:$0xf]
    %v1729 = vld [vmem:[#allocation5 + $0x68] sm:$0xf]
    %v1730 = vld [vmem:[#allocation5 + $0x6c] sm:$0xf]
    %v1731 = vld [vmem:[#allocation5 + $0x70] sm:$0xf]
    %v1732 = vld [vmem:[#allocation5 + $0x74] sm:$0xf]
    %v1733 = vld [vmem:[#allocation5 + $0x78] sm:$0xf]
    %v1734 = vld [vmem:[#allocation5 + $0x7c] sm:$0xf]
    %v1735 = vld [vmem:[#allocation5 + $0x80] sm:$0xf]
    %v1736 = vld [vmem:[#allocation5 + $0x84] sm:$0xf]
    %v1737 = vld [vmem:[#allocation5 + $0x88] sm:$0xf]
    %v1738 = vld [vmem:[#allocation5 + $0x8c] sm:$0xf]
    %v1739 = vld [vmem:[#allocation5 + $0x90] sm:$0xf]
    %v1740 = vld [vmem:[#allocation5 + $0x94] sm:$0xf]
    %v1741 = vld [vmem:[#allocation5 + $0x98] sm:$0xf]
    %v1742 = vld [vmem:[#allocation5 + $0x9c] sm:$0xf]
    %v1743 = vld [vmem:[#allocation5 + $0xa0] sm:$0xf]
    %v1744 = vld [vmem:[#allocation5 + $0xa4] sm:$0xf]
    %v1745 = vld [vmem:[#allocation5 + $0xa8] sm:$0xf]
    %v1746 = vld [vmem:[#allocation5 + $0xac] sm:$0xf]
    %v1747 = vld [vmem:[#allocation5 + $0xb0] sm:$0xf]
    %v1748 = vld [vmem:[#allocation5 + $0xb4] sm:$0xf]
    %v1749 = vld [vmem:[#allocation5 + $0xb8] sm:$0xf]
    %v1750 = vld [vmem:[#allocation5 + $0xbc] sm:$0xf]
    %v1751 = vld [vmem:[#allocation5 + $0xc0] sm:$0xf]
    %v1752 = vld [vmem:[#allocation5 + $0xc4] sm:$0xf]
    %v1753 = vld [vmem:[#allocation5 + $0xc8] sm:$0xf]
    %v1754 = vld [vmem:[#allocation5 + $0xcc] sm:$0xf]
    %v1755 = vld [vmem:[#allocation5 + $0xd0] sm:$0xf]
    %v1756 = vld [vmem:[#allocation5 + $0xd4] sm:$0xf]
    %v1757 = vld [vmem:[#allocation5 + $0xd8] sm:$0xf]
    %v1758 = vld [vmem:[#allocation5 + $0xdc] sm:$0xf]
    %v1759 = vld [vmem:[#allocation5 + $0xe0] sm:$0xf]
    %v1760 = vld [vmem:[#allocation5 + $0xe4] sm:$0xf]
    %v1761 = vld [vmem:[#allocation5 + $0xe8] sm:$0xf]
    %v1762 = vld [vmem:[#allocation5 + $0xec] sm:$0xf]
    %v1763 = vld [vmem:[#allocation5 + $0xf0] sm:$0xf]
    %v1764 = vld [vmem:[#allocation5 + $0xf4] sm:$0xf]
    %v1765 = vld [vmem:[#allocation5 + $0xf8] sm:$0xf]
    %v1766 = vld [vmem:[#allocation5 + $0xfc] sm:$0xf]
    %v1767 = vld [vmem:[%s4] sm:$0x1]
    %v1769 = vlaneseq
    %v1770 = vshrl.u32 %v1769, 7
    %v1771 = vsub.s32 0, %v1770
    %v1772 = vrot.slane %v1767, %v1771
    %v1838 = vunpack.c.l.b16 %v1703
    %v1839 = vunpack.c.l.b16 %v1704
    %v1840 = vunpack.c.l.b16 %v1705
    %v1841 = vunpack.c.l.b16 %v1706
    %v1842 = vunpack.c.l.b16 %v1707
    %v1843 = vunpack.c.l.b16 %v1708
    %v1844 = vunpack.c.l.b16 %v1709
    %v1845 = vunpack.c.l.b16 %v1710
    %v1846 = vunpack.c.l.b16 %v1711
    %v1847 = vunpack.c.l.b16 %v1712
    %v1848 = vunpack.c.l.b16 %v1713
    %v1849 = vunpack.c.l.b16 %v1714
    %v1850 = vunpack.c.l.b16 %v1715
    %v1851 = vunpack.c.l.b16 %v1716
    %v1852 = vunpack.c.l.b16 %v1717
    %v1853 = vunpack.c.l.b16 %v1718
    %v1854 = vunpack.c.l.b16 %v1719
    %v1855 = vunpack.c.l.b16 %v1720
    %v1856 = vunpack.c.l.b16 %v1721
    %v1857 = vunpack.c.l.b16 %v1722
    %v1858 = vunpack.c.l.b16 %v1723
    %v1859 = vunpack.c.l.b16 %v1724
    %v1860 = vunpack.c.l.b16 %v1725
    %v1861 = vunpack.c.l.b16 %v1726
    %v1862 = vunpack.c.l.b16 %v1727
    %v1863 = vunpack.c.l.b16 %v1728
    %v1864 = vunpack.c.l.b16 %v1729
    %v1865 = vunpack.c.l.b16 %v1730
    %v1866 = vunpack.c.l.b16 %v1731
    %v1867 = vunpack.c.l.b16 %v1732
    %v1868 = vunpack.c.l.b16 %v1733
    %v1869 = vunpack.c.l.b16 %v1734
    %v1870 = vunpack.c.l.b16 %v1735
    %v1871 = vunpack.c.l.b16 %v1736
    %v1872 = vunpack.c.l.b16 %v1737
    %v1873 = vunpack.c.l.b16 %v1738
    %v1874 = vunpack.c.l.b16 %v1739
    %v1875 = vunpack.c.l.b16 %v1740
    %v1876 = vunpack.c.l.b16 %v1741
    %v1877 = vunpack.c.l.b16 %v1742
    %v1878 = vunpack.c.l.b16 %v1743
    %v1879 = vunpack.c.l.b16 %v1744
    %v1880 = vunpack.c.l.b16 %v1745
    %v1881 = vunpack.c.l.b16 %v1746
    %v1882 = vunpack.c.l.b16 %v1747
    %v1883 = vunpack.c.l.b16 %v1748
    %v1884 = vunpack.c.l.b16 %v1749
    %v1885 = vunpack.c.l.b16 %v1750
    %v1886 = vunpack.c.l.b16 %v1751
    %v1887 = vunpack.c.l.b16 %v1752
    %v1888 = vunpack.c.l.b16 %v1753
    %v1889 = vunpack.c.l.b16 %v1754
    %v1890 = vunpack.c.l.b16 %v1755
    %v1891 = vunpack.c.l.b16 %v1756
    %v1892 = vunpack.c.l.b16 %v1757
    %v1893 = vunpack.c.l.b16 %v1758
    %v1894 = vunpack.c.l.b16 %v1759
    %v1895 = vunpack.c.l.b16 %v1760
    %v1896 = vunpack.c.l.b16 %v1761
    %v1897 = vunpack.c.l.b16 %v1762
    %v1898 = vunpack.c.l.b16 %v1763
    %v1899 = vunpack.c.l.b16 %v1764
    %v1900 = vunpack.c.l.b16 %v1765
    %v1901 = vunpack.c.l.b16 %v1766
    %v1902 = vpack.c.b16 %v1839, %v1838
    %v1903 = vpack.c.b16 %v1841, %v1840
    %v1904 = vpack.c.b16 %v1843, %v1842
    %v1905 = vpack.c.b16 %v1845, %v1844
    %v1906 = vpack.c.b16 %v1847, %v1846
    %v1907 = vpack.c.b16 %v1849, %v1848
    %v1908 = vpack.c.b16 %v1851, %v1850
    %v1909 = vpack.c.b16 %v1853, %v1852
    %v1910 = vpack.c.b16 %v1855, %v1854
    %v1911 = vpack.c.b16 %v1857, %v1856
    %v1912 = vpack.c.b16 %v1859, %v1858
    %v1913 = vpack.c.b16 %v1861, %v1860
    %v1914 = vpack.c.b16 %v1863, %v1862
    %v1915 = vpack.c.b16 %v1865, %v1864
    %v1916 = vpack.c.b16 %v1867, %v1866
    %v1917 = vpack.c.b16 %v1869, %v1868
    %v1918 = vpack.c.b16 %v1871, %v1870
    %v1919 = vpack.c.b16 %v1873, %v1872
    %v1920 = vpack.c.b16 %v1875, %v1874
    %v1921 = vpack.c.b16 %v1877, %v1876
    %v1922 = vpack.c.b16 %v1879, %v1878
    %v1923 = vpack.c.b16 %v1881, %v1880
    %v1924 = vpack.c.b16 %v1883, %v1882
    %v1925 = vpack.c.b16 %v1885, %v1884
    %v1926 = vpack.c.b16 %v1887, %v1886
    %v1927 = vpack.c.b16 %v1889, %v1888
    %v1928 = vpack.c.b16 %v1891, %v1890
    %v1929 = vpack.c.b16 %v1893, %v1892
    %v1930 = vpack.c.b16 %v1895, %v1894
    %v1931 = vpack.c.b16 %v1897, %v1896
    %v1932 = vpack.c.b16 %v1899, %v1898
    %v1933 = vpack.c.b16 %v1901, %v1900
    %1966 = vmatprep.subr.bf16.mxu0 0
    %1967 = vmatpush1.bf16.msra.mxu0 %v1909
    %1968 = vmatprep.subr.bf16.mxu0 0
    %1969 = vmatpush1.bf16.msra.mxu0 %v1908
    %1970 = vmatprep.subr.bf16.mxu0 0
    %1971 = vmatpush1.bf16.msra.mxu0 %v1907
    %1972 = vmatprep.subr.bf16.mxu0 0
    %1973 = vmatpush1.bf16.msra.mxu0 %v1906
    %1974 = vmatprep.subr.bf16.mxu0 0
    %1975 = vmatpush1.bf16.msra.mxu0 %v1905
    %1976 = vmatprep.subr.bf16.mxu0 0
    %1977 = vmatpush1.bf16.msra.mxu0 %v1904
    %1978 = vmatprep.subr.bf16.mxu0 0
    %1979 = vmatpush1.bf16.msra.mxu0 %v1903
    %1980 = vmatprep.subr.bf16.mxu0 0
    %1981 = vmatpush1.bf16.msra.mxu0 %v1902
    %1982 = vmatprep.subr.bf16.mxu0 0
    %1983 = vmatpush2.bf16.msra.mxu0 %v1917
    %1984 = vmatprep.subr.bf16.mxu0 0
    %1985 = vmatpush2.bf16.msra.mxu0 %v1916
    %1986 = vmatprep.subr.bf16.mxu0 0
    %1987 = vmatpush2.bf16.msra.mxu0 %v1915
    %1988 = vmatprep.subr.bf16.mxu0 0
    %1989 = vmatpush2.bf16.msra.mxu0 %v1914
    %1990 = vmatprep.subr.bf16.mxu0 0
    %1991 = vmatpush2.bf16.msra.mxu0 %v1913
    %1992 = vmatprep.subr.bf16.mxu0 0
    %1993 = vmatpush2.bf16.msra.mxu0 %v1912
    %1994 = vmatprep.subr.bf16.mxu0 0
    %1995 = vmatpush2.bf16.msra.mxu0 %v1911
    %1996 = vmatprep.subr.bf16.mxu0 0
    %1997 = vmatpush2.bf16.msra.mxu0 %v1910
    %1998 = vmatprep.mubr.bf16.mxu0 %v1700
    %1999 = vmatmul.mubr.bf16.gmra.mxu0 %v1699
    %v2000 = vpop.f32.mrf.mxu0
    %v2001 = vadd.f32 %v1772, %v2000
    %v2002 = vpop.f32.mrf.mxu0
    %v2003 = vpop.f32.mrf.mxu0
    %v2004 = vpop.f32.mrf.mxu0
    %2005 = vdwg.mxu0
    %2006 = vmatprep.subr.bf16.mxu0 0
    %2007 = vmatpush1.bf16.msra.mxu0 %v1925
    %2008 = vmatprep.subr.bf16.mxu0 0
    %2009 = vmatpush1.bf16.msra.mxu0 %v1924
    %2010 = vmatprep.subr.bf16.mxu0 0
    %2011 = vmatpush1.bf16.msra.mxu0 %v1923
    %2012 = vmatprep.subr.bf16.mxu0 0
    %2013 = vmatpush1.bf16.msra.mxu0 %v1922
    %2014 = vmatprep.subr.bf16.mxu0 0
    %2015 = vmatpush1.bf16.msra.mxu0 %v1921
    %2016 = vmatprep.subr.bf16.mxu0 0
    %2017 = vmatpush1.bf16.msra.mxu0 %v1920
    %2018 = vmatprep.subr.bf16.mxu0 0
    %2019 = vmatpush1.bf16.msra.mxu0 %v1919
    %2020 = vmatprep.subr.bf16.mxu0 0
    %2021 = vmatpush1.bf16.msra.mxu0 %v1918
    %2022 = vmatprep.subr.bf16.mxu0 0
    %2023 = vmatpush2.bf16.msra.mxu0 %v1933
    %2024 = vmatprep.subr.bf16.mxu0 0
    %2025 = vmatpush2.bf16.msra.mxu0 %v1932
    %2026 = vmatprep.subr.bf16.mxu0 0
    %2027 = vmatpush2.bf16.msra.mxu0 %v1931
    %2028 = vmatprep.subr.bf16.mxu0 0
    %2029 = vmatpush2.bf16.msra.mxu0 %v1930
    %2030 = vmatprep.subr.bf16.mxu0 0
    %2031 = vmatpush2.bf16.msra.mxu0 %v1929
    %2032 = vmatprep.subr.bf16.mxu0 0
    %2033 = vmatpush2.bf16.msra.mxu0 %v1928
    %2034 = vmatprep.subr.bf16.mxu0 0
    %2035 = vmatpush2.bf16.msra.mxu0 %v1927
    %2036 = vmatprep.subr.bf16.mxu0 0
    %2037 = vmatpush2.bf16.msra.mxu0 %v1926
    %2038 = vmatprep.mubr.bf16.mxu0 %v1702
    %2039 = vmatmul.mubr.bf16.gmra.mxu0 %v1701
    %v2040 = vpop.f32.mrf.mxu0
    %v2041 = vadd.f32 %v2001, %v2040
    %v2042 = vpop.f32.mrf.mxu0
    %v2043 = vpop.f32.mrf.mxu0
    %v2044 = vpop.f32.mrf.mxu0
    %2045 = vdwg.mxu0
    %vm2046 = vcmp.gt.f32.partialorder %v2041, 0.0
    %v2047 = vmul.f32 %v2041, 0.01
    %v2048 = vsel %vm2046, %v2041, %v2047
    %v2049 = vpack.c.bf16 %v2048, %v2048
    %v2050 = vld [vmem:[%s5] sm:$0xf]
    %v2051 = vld [vmem:[%s5 + $0x4] sm:$0xf]
    %v2052 = vld [vmem:[%s5 + $0x8] sm:$0xf]
    %v2053 = vld [vmem:[%s5 + $0xc] sm:$0xf]
    %v2054 = vld [vmem:[%s5 + $0x10] sm:$0xf]
    %v2055 = vld [vmem:[%s5 + $0x14] sm:$0xf]
    %v2056 = vld [vmem:[%s5 + $0x18] sm:$0xf]
    %v2057 = vld [vmem:[%s5 + $0x1c] sm:$0xf]
    %v2058 = vld [vmem:[%s5 + $0x20] sm:$0xf]
    %v2059 = vld [vmem:[%s5 + $0x24] sm:$0xf]
    %v2060 = vld [vmem:[%s5 + $0x28] sm:$0xf]
    %v2061 = vld [vmem:[%s5 + $0x2c] sm:$0xf]
    %v2062 = vld [vmem:[%s5 + $0x30] sm:$0xf]
    %v2063 = vld [vmem:[%s5 + $0x34] sm:$0xf]
    %v2064 = vld [vmem:[%s5 + $0x38] sm:$0xf]
    %v2065 = vld [vmem:[%s5 + $0x3c] sm:$0xf]
    %v2066 = vld [vmem:[%s6] sm:$0x1]
    %v2068 = vlaneseq
    %v2069 = vshrl.u32 %v2068, 7
    %v2070 = vsub.s32 0, %v2069
    %v2071 = vrot.slane %v2066, %v2070
    %v2089 = vunpack.c.l.b16 %v2050
    %v2090 = vunpack.c.l.b16 %v2051
    %v2091 = vunpack.c.l.b16 %v2052
    %v2092 = vunpack.c.l.b16 %v2053
    %v2093 = vunpack.c.l.b16 %v2054
    %v2094 = vunpack.c.l.b16 %v2055
    %v2095 = vunpack.c.l.b16 %v2056
    %v2096 = vunpack.c.l.b16 %v2057
    %v2097 = vunpack.c.l.b16 %v2058
    %v2098 = vunpack.c.l.b16 %v2059
    %v2099 = vunpack.c.l.b16 %v2060
    %v2100 = vunpack.c.l.b16 %v2061
    %v2101 = vunpack.c.l.b16 %v2062
    %v2102 = vunpack.c.l.b16 %v2063
    %v2103 = vunpack.c.l.b16 %v2064
    %v2104 = vunpack.c.l.b16 %v2065
    %v2105 = vpack.c.b16 %v2090, %v2089
    %v2106 = vpack.c.b16 %v2092, %v2091
    %v2107 = vpack.c.b16 %v2094, %v2093
    %v2108 = vpack.c.b16 %v2096, %v2095
    %v2109 = vpack.c.b16 %v2098, %v2097
    %v2110 = vpack.c.b16 %v2100, %v2099
    %v2111 = vpack.c.b16 %v2102, %v2101
    %v2112 = vpack.c.b16 %v2104, %v2103
    %2121 = vmatprep.subr.bf16.mxu0 0
    %2122 = vmatpush1.bf16.msra.mxu0 %v2112
    %2123 = vmatprep.subr.bf16.mxu0 0
    %2124 = vmatpush1.bf16.msra.mxu0 %v2111
    %2125 = vmatprep.subr.bf16.mxu0 0
    %2126 = vmatpush1.bf16.msra.mxu0 %v2110
    %2127 = vmatprep.subr.bf16.mxu0 0
    %2128 = vmatpush1.bf16.msra.mxu0 %v2109
    %2129 = vmatprep.subr.bf16.mxu0 0
    %2130 = vmatpush1.bf16.msra.mxu0 %v2108
    %2131 = vmatprep.subr.bf16.mxu0 0
    %2132 = vmatpush1.bf16.msra.mxu0 %v2107
    %2133 = vmatprep.subr.bf16.mxu0 0
    %2134 = vmatpush1.bf16.msra.mxu0 %v2106
    %2135 = vmatprep.subr.bf16.mxu0 0
    %2136 = vmatpush1.bf16.msra.mxu0 %v2105
    %2137 = vmatprep.subr.bf16.mxu0 0
    %2138 = vmatpush2.bf16.msra.mxu0 0
    %2139 = vmatprep.subr.bf16.mxu0 0
    %2140 = vmatpush2.bf16.msra.mxu0 0
    %2141 = vmatprep.subr.bf16.mxu0 0
    %2142 = vmatpush2.bf16.msra.mxu0 0
    %2143 = vmatprep.subr.bf16.mxu0 0
    %2144 = vmatpush2.bf16.msra.mxu0 0
    %2145 = vmatprep.subr.bf16.mxu0 0
    %2146 = vmatpush2.bf16.msra.mxu0 0
    %2147 = vmatprep.subr.bf16.mxu0 0
    %2148 = vmatpush2.bf16.msra.mxu0 0
    %2149 = vmatprep.subr.bf16.mxu0 0
    %2150 = vmatpush2.bf16.msra.mxu0 0
    %2151 = vmatprep.subr.bf16.mxu0 0
    %2152 = vmatpush2.bf16.msra.mxu0 0
    %2153 = vmatprep.mubr.bf16.mxu0 0
    %2154 = vmatmul.mubr.bf16.gmra.mxu0 %v2049
    %v2155 = vpop.f32.mrf.mxu0
    %v2156 = vadd.f32 %v2071, %v2155
    %v2157 = vpop.f32.mrf.mxu0
    %v2158 = vpop.f32.mrf.mxu0
    %v2159 = vpop.f32.mrf.mxu0
    %2160 = vdwg.mxu0
    %2161 = vst [vmem:[#allocation7] sm:$0xff] %v2156
    // Predicated region
    $region38: #{linear_network2_forward.1} parent=1 // pred_check
      _
    $region39: #{linear_network2_forward.1} parent=1 // pred_check_branch
      %2163 = sbr.rel (0) target = $region41
    $region40: #{linear_network2_forward.1} parent=1 // pred_region
      %s2165 = ssub.s32 128, 32
      %2166 = vsyncadd [#allocation4], %s2165
      %s2167 = sshll.u32 [#allocation7], 4
      %s2168 = int_to_ptr.vmem [resolvable:$true] %s2167
      %2173 = dma.vmem_to_hbm [thread:$0]  %s2168, 32, %s7, [#allocation4], 32, 32, 2
    $region41: #{linear_network2_forward.1} parent=1 // pred_fallthru
      _
    // Predicated region
    $region42: #{linear_network2_forward.1} parent=1 // pred_check
      _
    $region43: #{linear_network2_forward.1} parent=1 // pred_check_branch
      %2175 = sbr.rel (0) target = $region45
    $region44: #{linear_network2_forward.1} parent=1 // pred_region
      %2176 = dma.done [#allocation4], 128
    $region45: #{linear_network2_forward.1} parent=1 // pred_fallthru
      _
    %2177 = vsyncpa [#allocation3], 1
    %2178 = vsyncpa [#allocation6], 1
    %2179 = vsyncpa [#allocation4], 1

</llo_original>
